<compile_context>
chip_gen: v6e
topology: v6e:2x2x1
jax: 0.10.0
libtpu: 0.0.40
codegen_flags: <defaults>
</compile_context>

<pallas_src>
import functools

import jax
import jax.numpy as jnp
from jax.experimental import pallas as pl
from jax.experimental.pallas import tpu as pltpu


def _round_up(x, m):
    return ((x + m - 1) // m) * m


def _encoder_kernel(x0_ref, a_ref, s_ref, wc_ref, whh_ref, b_ref,
                    out_ref, x_sc, *, hp):
    """One GatedGraphConv layer per grid step + final scatter_sum.

    x0_ref : [Np, Hp]       padded node features (cols >= H zero)
    a_ref  : [Np, Np] bf16  dense adjacency, A[dst, src] = edge multiplicity
    s_ref  : [Gp, Np]       one-hot graph assignment (padded rows/cols zero)
    wc_ref : [Hp, 3*Hp]     this layer's folded weight W[l] @ W_ih.T (gate-block
                            lane-padded); selected by the layer grid axis
    whh_ref: [Hp, 3*Hp]     shared hidden weights W_hh.T (gate-block padded)
    b_ref  : [8, Hp]        rows 0..3: b_r(=b_ih_r+b_hh_r), b_z, b_in, b_hn
    out_ref: [Gp, Hp]       written only on the last layer
    x_sc   : [Np, Hp] f32   node-state accumulator, persists across grid steps
    """
    l = pl.program_id(0)

    @pl.when(l == 0)
    def _():
        x_sc[...] = x0_ref[...]

    x = x_sc[...]                                              # [Np, Hp]
    a = a_ref[...].astype(jnp.float32)                         # exact (small ints)

    # Aggregation first (associativity): the N^2 matmul contracts over Hp only.
    ax = jnp.dot(a, x, preferred_element_type=jnp.float32)     # [Np, Hp]
    gi = jnp.dot(ax, wc_ref[...], preferred_element_type=jnp.float32)   # [Np, 3Hp]
    gh = jnp.dot(x, whh_ref[...], preferred_element_type=jnp.float32)   # [Np, 3Hp]

    b_r = b_ref[0:1, :]
    b_z = b_ref[1:2, :]
    b_in = b_ref[2:3, :]
    b_hn = b_ref[3:4, :]

    # GRUCell (PyTorch gate order r, z, n); all slices on 128-lane boundaries.
    r = jax.nn.sigmoid(gi[:, 0:hp] + gh[:, 0:hp] + b_r)
    z = jax.nn.sigmoid(gi[:, hp:2 * hp] + gh[:, hp:2 * hp] + b_z)
    n = jnp.tanh(gi[:, 2 * hp:3 * hp] + b_in + r * (gh[:, 2 * hp:3 * hp] + b_hn))
    x_sc[...] = (1.0 - z) * n + z * x

    @pl.when(l == pl.num_programs(0) - 1)
    def _():
        # scatter_sum over graphs == S @ x ; (8,128)-dense output tile.
        out_ref[...] = jnp.dot(s_ref[...], x_sc[...],
                               preferred_element_type=jnp.float32)


def encoder_forward(x_in, edge_index, batch, params, *, h_dim, n_layers, num_graphs):
    """Glue: pad / pack weights, build dense adjacency & assignment, call kernel."""
    N, in_dim = x_in.shape
    assert in_dim <= h_dim
    H = h_dim
    Hp = _round_up(max(H, 128), 128)          # lane-pad hidden dim
    Np = _round_up(max(N, 128), 128)          # lane/sublane-dense node dim
    Gp = _round_up(max(num_graphs, 8), 8)     # sublane-pad graph count

    # GatedGraphConv zero-pads input features up to h_dim; pad further to Hp/Np.
    x0 = jnp.zeros((Np, Hp), jnp.float32).at[:N, :in_dim].set(
        x_in.astype(jnp.float32))

    src, dst = edge_index[0], edge_index[1]
    # A[dst, src] += 1  ->  (A @ x)[i] = sum over incoming edges of x[src].
    # bf16 is exact for small integer multiplicities; halves N^2 VMEM/DMA.
    adj = (jnp.zeros((Np, Np), jnp.float32).at[dst, src].add(1.0)
           .astype(jnp.bfloat16))
    # S[batch[i], i] = 1  ->  S @ x == scatter_sum(x, batch, dim=0)
    sel = jnp.zeros((Gp, Np), jnp.float32).at[batch, jnp.arange(N)].set(1.0)

    w = params["weight"].astype(jnp.float32)          # [L, H, H]
    w_ih = params["w_ih"].astype(jnp.float32)         # [3H, H]
    w_hh = params["w_hh"].astype(jnp.float32)         # [3H, H]
    b_ih = params["b_ih"].astype(jnp.float32)         # [3H]
    b_hh = params["b_hh"].astype(jnp.float32)         # [3H]

    # Fold per-layer propagation weight into GRU input weights:
    #   Wc[l] = W[l] @ W_ih.T  -> [L, H, 3H]
    wc = jnp.einsum("lij,kj->lik", w, w_ih)
    whh_t = w_hh.T                                    # [H, 3H]

    # Gate-block lane padding: each of the 3 gate blocks padded to Hp lanes.
    wc_pack = jnp.zeros((n_layers, Hp, 3 * Hp), jnp.float32)
    whh_pack = jnp.zeros((Hp, 3 * Hp), jnp.float32)
    for g in range(3):
        wc_pack = wc_pack.at[:, :H, g * Hp:g * Hp + H].set(
            wc[:, :, g * H:(g + 1) * H])
        whh_pack = whh_pack.at[:H, g * Hp:g * Hp + H].set(
            whh_t[:, g * H:(g + 1) * H])

    # Biases: pre-fold r/z, keep n-gate biases separate (b_hn sits inside r*gh_n).
    bih = b_ih.reshape(3, H)
    bhh = b_hh.reshape(3, H)
    b_pack = jnp.zeros((8, Hp), jnp.float32)
    b_pack = b_pack.at[0, :H].set(bih[0] + bhh[0])    # b_r
    b_pack = b_pack.at[1, :H].set(bih[1] + bhh[1])    # b_z
    b_pack = b_pack.at[2, :H].set(bih[2])             # b_in
    b_pack = b_pack.at[3, :H].set(bhh[2])             # b_hn

    kernel = functools.partial(_encoder_kernel, hp=Hp)
    out_pad = pl.pallas_call(
        kernel,
        out_shape=jax.ShapeDtypeStruct((Gp, Hp), jnp.float32),
        grid_spec=pltpu.PrefetchScalarGridSpec(
            num_scalar_prefetch=0,
            grid=(n_layers,),
            in_specs=[
                pl.BlockSpec((Np, Hp), lambda l: (0, 0)),          # x0
                pl.BlockSpec((Np, Np), lambda l: (0, 0)),          # A (bf16)
                pl.BlockSpec((Gp, Np), lambda l: (0, 0)),          # S
                pl.BlockSpec((None, Hp, 3 * Hp), lambda l: (l, 0, 0)),  # Wc[l]
                pl.BlockSpec((Hp, 3 * Hp), lambda l: (0, 0)),      # shared Whh
                pl.BlockSpec((8, Hp), lambda l: (0, 0)),           # biases
            ],
            out_specs=pl.BlockSpec((Gp, Hp), lambda l: (0, 0)),
            scratch_shapes=[pltpu.VMEM((Np, Hp), jnp.float32)],    # node state
        ),
        compiler_params=pltpu.CompilerParams(
            dimension_semantics=("arbitrary",),        # layers are sequential
            vmem_limit_bytes=64 * 1024 * 1024,
        ),
    )(x0, adj, sel, wc_pack, whh_pack, b_pack)
    return out_pad[:num_graphs, :h_dim]


def encoder_reference(x_in, edge_index, batch, params, *, h_dim, n_layers, num_graphs):
    """Pure-JAX reference mirroring GatedGraphConv + scatter_sum."""
    N, in_dim = x_in.shape
    x = jnp.pad(x_in.astype(jnp.float32), ((0, 0), (0, h_dim - in_dim)))
    src, dst = edge_index[0], edge_index[1]
    w, w_ih, w_hh, b_ih, b_hh = (params["weight"], params["w_ih"], params["w_hh"],
                                 params["b_ih"], params["b_hh"])
    for l in range(n_layers):
        m = x @ w[l]
        agg = jnp.zeros_like(m).at[dst].add(m[src])
        gi = agg @ w_ih.T + b_ih
        gh = x @ w_hh.T + b_hh
        gir, giz, gin = jnp.split(gi, 3, axis=1)
        ghr, ghz, ghn = jnp.split(gh, 3, axis=1)
        r = jax.nn.sigmoid(gir + ghr)
        z = jax.nn.sigmoid(giz + ghz)
        n = jnp.tanh(gin + r * ghn)
        x = (1.0 - z) * n + z * x
    return jnp.zeros((num_graphs, h_dim), jnp.float32).at[batch].add(x)


def init_params(key, h_dim, n_layers):
    ks = jax.random.split(key, 5)
    scale = 1.0 / jnp.sqrt(h_dim)
    return {
        "weight": jax.random.uniform(ks[0], (n_layers, h_dim, h_dim), jnp.float32, -scale, scale),
        "w_ih": jax.random.uniform(ks[1], (3 * h_dim, h_dim), jnp.float32, -scale, scale),
        "w_hh": jax.random.uniform(ks[2], (3 * h_dim, h_dim), jnp.float32, -scale, scale),
        "b_ih": jax.random.uniform(ks[3], (3 * h_dim,), jnp.float32, -scale, scale),
        "b_hh": jax.random.uniform(ks[4], (3 * h_dim,), jnp.float32, -scale, scale),
    }


if __name__ == "__main__":
    h_dim, n_layers = 32, 3
    N, in_dim, num_graphs = 16, 8, 2

    key = jax.random.PRNGKey(0)
    k_x, k_p, _ = jax.random.split(key, 3)

    x_in = jax.random.normal(k_x, (N, in_dim), jnp.float32)
    # deterministic small graph: a ring plus a few extra edges
    ring_src = jnp.arange(N, dtype=jnp.int32)
    ring_dst = (ring_src + 1) % N
    extra_src = jnp.array([0, 3, 5, 9, 12, 14], dtype=jnp.int32)
    extra_dst = jnp.array([7, 1, 10, 2, 15, 6], dtype=jnp.int32)
    edge_index = jnp.stack([jnp.concatenate([ring_src, extra_src]),
                            jnp.concatenate([ring_dst, extra_dst])])
    batch = jnp.concatenate([jnp.zeros(N // 2, jnp.int32),
                             jnp.ones(N - N // 2, jnp.int32)])

    params = init_params(k_p, h_dim, n_layers)

    out = encoder_forward(x_in, edge_index, batch, params,
                          h_dim=h_dim, n_layers=n_layers, num_graphs=num_graphs)
    out = jax.block_until_ready(out)

    ref = encoder_reference(x_in, edge_index, batch, params,
                            h_dim=h_dim, n_layers=n_layers, num_graphs=num_graphs)
    assert out.shape == (num_graphs, h_dim)
    assert jnp.allclose(out, ref, atol=1e-4, rtol=1e-4), "mismatch vs reference"

    print("KERNEL_OK")
</pallas_src>

<mosaic_0001>
module attributes {stable_mosaic.version = 11 : i64} {
  func.func @_encoder_kernel(%arg0: i32, %arg1: memref<128x128xf32, #tpu.memory_space<vmem>>, %arg2: memref<128x128xbf16, #tpu.memory_space<vmem>>, %arg3: memref<8x128xf32, #tpu.memory_space<vmem>>, %arg4: memref<1x128x384xf32, #tpu.memory_space<vmem>>, %arg5: memref<128x384xf32, #tpu.memory_space<vmem>>, %arg6: memref<8x128xf32, #tpu.memory_space<vmem>>, %arg7: memref<8x128xf32, #tpu.memory_space<vmem>>, %arg8: memref<128x128xf32, #tpu.memory_space<vmem>>) attributes {dimension_semantics = [#tpu.dimension_semantics<arbitrary>], iteration_bounds = array<i64: 3>, scalar_prefetch = 0 : i64, scratch_operands = 1 : i64, tpu.core_type = #tpu.core_type<tc>, window_params = [{pipeline_mode = #tpu.pipeline_mode<synchronous>, transform_indices = @transform_0, window_bounds = array<i64: 128, 128>}, {pipeline_mode = #tpu.pipeline_mode<synchronous>, transform_indices = @transform_1, window_bounds = array<i64: 128, 128>}, {pipeline_mode = #tpu.pipeline_mode<synchronous>, transform_indices = @transform_2, window_bounds = array<i64: 8, 128>}, {transform_indices = @transform_3, window_bounds = array<i64: 1, 128, 384>}, {pipeline_mode = #tpu.pipeline_mode<synchronous>, transform_indices = @transform_4, window_bounds = array<i64: 128, 384>}, {pipeline_mode = #tpu.pipeline_mode<synchronous>, transform_indices = @transform_5, window_bounds = array<i64: 8, 128>}, {pipeline_mode = #tpu.pipeline_mode<synchronous>, transform_indices = @transform_6, window_bounds = array<i64: 8, 128>}]} {
    %c0_i32 = arith.constant 0 : i32
    %0 = arith.cmpi eq, %arg0, %c0_i32 : i32
    %1 = arith.extui %0 : i1 to i32
    %c0_i32_0 = arith.constant 0 : i32
    %2 = arith.cmpi ne, %1, %c0_i32_0 : i32
    scf.if %2 {
      %c0_22 = arith.constant 0 : index
      %c0_23 = arith.constant 0 : index
      %54 = vector.load %arg1[%c0_22, %c0_23] : memref<128x128xf32, #tpu.memory_space<vmem>>, vector<128x128xf32>
      %c0_24 = arith.constant 0 : index
      %c0_25 = arith.constant 0 : index
      %55 = vector.load %arg8[%c0_24, %c0_25] : memref<128x128xf32, #tpu.memory_space<vmem>>, vector<128x128xf32>
      tpu.vector_store %arg8[%c0_24, %c0_25], %54 {strides = array<i32>} : memref<128x128xf32, #tpu.memory_space<vmem>>, vector<128x128xf32>,
    } else {
    }
    %c0 = arith.constant 0 : index
    %c0_1 = arith.constant 0 : index
    %3 = vector.load %arg8[%c0, %c0_1] : memref<128x128xf32, #tpu.memory_space<vmem>>, vector<128x128xf32>
    %c0_2 = arith.constant 0 : index
    %c0_3 = arith.constant 0 : index
    %4 = vector.load %arg2[%c0_2, %c0_3] : memref<128x128xbf16, #tpu.memory_space<vmem>>, vector<128x128xbf16>
    %5 = arith.extf %4 : vector<128x128xbf16> to vector<128x128xf32>
    %cst = arith.constant dense<0.000000e+00> : vector<128x128xf32>
    %6 = tpu.matmul %5, %3, %cst {dimension_numbers = #tpu.dot_dimension_numbers<[1], [0], [0], [1], [0, 0, 1, 1], [], []>} : vector<128x128xf32>, vector<128x128xf32>, vector<128x128xf32> -> vector<128x128xf32>
    %c0_4 = arith.constant 0 : index
    %c0_5 = arith.constant 0 : index
    %c0_6 = arith.constant 0 : index
    %7 = vector.load %arg4[%c0_4, %c0_5, %c0_6] : memref<1x128x384xf32, #tpu.memory_space<vmem>>, vector<1x128x384xf32>
    %8 = vector.shape_cast %7 : vector<1x128x384xf32> to vector<128x384xf32>
    %cst_7 = arith.constant dense<0.000000e+00> : vector<128x384xf32>
    %9 = tpu.matmul %6, %8, %cst_7 {dimension_numbers = #tpu.dot_dimension_numbers<[1], [0], [0], [1], [0, 0, 1, 1], [], []>} : vector<128x128xf32>, vector<128x384xf32>, vector<128x384xf32> -> vector<128x384xf32>
    %c0_8 = arith.constant 0 : index
    %c0_9 = arith.constant 0 : index
    %10 = vector.load %arg5[%c0_8, %c0_9] : memref<128x384xf32, #tpu.memory_space<vmem>>, vector<128x384xf32>
    %cst_10 = arith.constant dense<0.000000e+00> : vector<128x384xf32>
    %11 = tpu.matmul %3, %10, %cst_10 {dimension_numbers = #tpu.dot_dimension_numbers<[1], [0], [0], [1], [0, 0, 1, 1], [], []>} : vector<128x128xf32>, vector<128x384xf32>, vector<128x384xf32> -> vector<128x384xf32>
    %c0_11 = arith.constant 0 : index
    %c0_12 = arith.constant 0 : index
    %12 = vector.load %arg6[%c0_11, %c0_12] : memref<8x128xf32, #tpu.memory_space<vmem>>, vector<1x128xf32>
    %c1 = arith.constant 1 : index
    %c0_13 = arith.constant 0 : index
    %13 = vector.load %arg6[%c1, %c0_13] : memref<8x128xf32, #tpu.memory_space<vmem>>, vector<1x128xf32>
    %c2 = arith.constant 2 : index
    %c0_14 = arith.constant 0 : index
    %14 = vector.load %arg6[%c2, %c0_14] : memref<8x128xf32, #tpu.memory_space<vmem>>, vector<1x128xf32>
    %c3 = arith.constant 3 : index
    %c0_15 = arith.constant 0 : index
    %15 = vector.load %arg6[%c3, %c0_15] : memref<8x128xf32, #tpu.memory_space<vmem>>, vector<1x128xf32>
    %16 = vector.extract_strided_slice %9 {offsets = [0, 0], sizes = [128, 128], strides = [1, 1]} : vector<128x384xf32> to vector<128x128xf32>
    %17 = vector.extract_strided_slice %11 {offsets = [0, 0], sizes = [128, 128], strides = [1, 1]} : vector<128x384xf32> to vector<128x128xf32>
    %18 = arith.addf %16, %17 : vector<128x128xf32>
    %19 = vector.broadcast %12 : vector<1x128xf32> to vector<128x128xf32>
    %20 = arith.addf %18, %19 : vector<128x128xf32>
    %21 = arith.negf %20 : vector<128x128xf32>
    %22 = math.exp %21 : vector<128x128xf32>
    %cst_16 = arith.constant 1.000000e+00 : f32
    %23 = vector.broadcast %cst_16 : f32 to vector<128x128xf32>
    %24 = arith.addf %23, %22 : vector<128x128xf32>
    %25 = arith.divf %23, %24 : vector<128x128xf32>
    %26 = vector.extract_strided_slice %9 {offsets = [0, 128], sizes = [128, 128], strides = [1, 1]} : vector<128x384xf32> to vector<128x128xf32>
    %27 = vector.extract_strided_slice %11 {offsets = [0, 128], sizes = [128, 128], strides = [1, 1]} : vector<128x384xf32> to vector<128x128xf32>
    %28 = arith.addf %26, %27 : vector<128x128xf32>
    %29 = vector.broadcast %13 : vector<1x128xf32> to vector<128x128xf32>
    %30 = arith.addf %28, %29 : vector<128x128xf32>
    %31 = arith.negf %30 : vector<128x128xf32>
    %32 = math.exp %31 : vector<128x128xf32>
    %cst_17 = arith.constant 1.000000e+00 : f32
    %33 = vector.broadcast %cst_17 : f32 to vector<128x128xf32>
    %34 = arith.addf %33, %32 : vector<128x128xf32>
    %35 = arith.divf %33, %34 : vector<128x128xf32>
    %36 = vector.extract_strided_slice %9 {offsets = [0, 256], sizes = [128, 128], strides = [1, 1]} : vector<128x384xf32> to vector<128x128xf32>
    %37 = vector.broadcast %14 : vector<1x128xf32> to vector<128x128xf32>
    %38 = arith.addf %36, %37 : vector<128x128xf32>
    %39 = vector.extract_strided_slice %11 {offsets = [0, 256], sizes = [128, 128], strides = [1, 1]} : vector<128x384xf32> to vector<128x128xf32>
    %40 = vector.broadcast %15 : vector<1x128xf32> to vector<128x128xf32>
    %41 = arith.addf %39, %40 : vector<128x128xf32>
    %42 = arith.mulf %25, %41 : vector<128x128xf32>
    %43 = arith.addf %38, %42 : vector<128x128xf32>
    %44 = math.tanh %43 : vector<128x128xf32>
    %cst_18 = arith.constant 1.000000e+00 : f32
    %45 = vector.broadcast %cst_18 : f32 to vector<128x128xf32>
    %46 = arith.subf %45, %35 : vector<128x128xf32>
    %47 = arith.mulf %46, %44 : vector<128x128xf32>
    %48 = arith.mulf %35, %3 : vector<128x128xf32>
    %49 = arith.addf %47, %48 : vector<128x128xf32>
    %c0_19 = arith.constant 0 : index
    %c0_20 = arith.constant 0 : index
    %50 = vector.load %arg8[%c0_19, %c0_20] : memref<128x128xf32, #tpu.memory_space<vmem>>, vector<128x128xf32>
    tpu.vector_store %arg8[%c0_19, %c0_20], %49 {strides = array<i32>} : memref<128x128xf32, #tpu.memory_space<vmem>>, vector<128x128xf32>,
    %c2_i32 = arith.constant 2 : i32
    %51 = arith.cmpi eq, %arg0, %c2_i32 : i32
    %52 = arith.extui %51 : i1 to i32
    %c0_i32_21 = arith.constant 0 : i32
    %53 = arith.cmpi ne, %52, %c0_i32_21 : i32
    scf.if %53 {
      %c0_22 = arith.constant 0 : index
      %c0_23 = arith.constant 0 : index
      %54 = vector.load %arg3[%c0_22, %c0_23] : memref<8x128xf32, #tpu.memory_space<vmem>>, vector<8x128xf32>
      %c0_24 = arith.constant 0 : index
      %c0_25 = arith.constant 0 : index
      %55 = vector.load %arg8[%c0_24, %c0_25] : memref<128x128xf32, #tpu.memory_space<vmem>>, vector<128x128xf32>
      %cst_26 = arith.constant dense<0.000000e+00> : vector<8x128xf32>
      %56 = tpu.matmul %54, %55, %cst_26 {dimension_numbers = #tpu.dot_dimension_numbers<[1], [0], [0], [1], [0, 0, 1, 1], [], []>} : vector<8x128xf32>, vector<128x128xf32>, vector<8x128xf32> -> vector<8x128xf32>
      %c0_27 = arith.constant 0 : index
      %c0_28 = arith.constant 0 : index
      %57 = vector.load %arg7[%c0_27, %c0_28] : memref<8x128xf32, #tpu.memory_space<vmem>>, vector<8x128xf32>
      tpu.vector_store %arg7[%c0_27, %c0_28], %56 {strides = array<i32>} : memref<8x128xf32, #tpu.memory_space<vmem>>, vector<8x128xf32>,
    } else {
    }
    return
  }
  func.func @transform_0(%arg0: i32) -> (i32, i32) {
    %c0_i32 = arith.constant 0 : i32
    %c0_i32_0 = arith.constant 0 : i32
    %c0_i32_1 = arith.constant 0 : i32
    return %c0_i32, %c0_i32_0 : i32, i32
  }
  func.func @transform_1(%arg0: i32) -> (i32, i32) {
    %c0_i32 = arith.constant 0 : i32
    %c0_i32_0 = arith.constant 0 : i32
    %c0_i32_1 = arith.constant 0 : i32
    return %c0_i32, %c0_i32_0 : i32, i32
  }
  func.func @transform_2(%arg0: i32) -> (i32, i32) {
    %c0_i32 = arith.constant 0 : i32
    %c0_i32_0 = arith.constant 0 : i32
    %c0_i32_1 = arith.constant 0 : i32
    return %c0_i32, %c0_i32_0 : i32, i32
  }
  func.func @transform_3(%arg0: i32) -> (i32, i32, i32) {
    %c0_i32 = arith.constant 0 : i32
    %c0_i32_0 = arith.constant 0 : i32
    %c0_i32_1 = arith.constant 0 : i32
    return %arg0, %c0_i32, %c0_i32_0 : i32, i32, i32
  }
  func.func @transform_4(%arg0: i32) -> (i32, i32) {
    %c0_i32 = arith.constant 0 : i32
    %c0_i32_0 = arith.constant 0 : i32
    %c0_i32_1 = arith.constant 0 : i32
    return %c0_i32, %c0_i32_0 : i32, i32
  }
  func.func @transform_5(%arg0: i32) -> (i32, i32) {
    %c0_i32 = arith.constant 0 : i32
    %c0_i32_0 = arith.constant 0 : i32
    %c0_i32_1 = arith.constant 0 : i32
    return %c0_i32, %c0_i32_0 : i32, i32
  }
  func.func @transform_6(%arg0: i32) -> (i32, i32) {
    %c0_i32 = arith.constant 0 : i32
    %c0_i32_0 = arith.constant 0 : i32
    %c0_i32_1 = arith.constant 0 : i32
    return %c0_i32, %c0_i32_0 : i32, i32
  }
}

</mosaic_0001>

<llo_original>
// kernel: tpu_custom_call.1
$region0: #{tpu_custom_call.1}
  #allocation0 [shape = 'u32[]', space=smem, size = 0x4, offset = 0x4, fixed_abs, tag = 'smem constant byte address 0x4 - core index']
  #allocation1 [shape = 'u32[144,128]{1,0:T(1,128)}', space=vmem, size = 0x12000, scoped, tag = 'internal scratch']
  #allocation2 [shape = 'f32[128,128]{1,0:T(8,128)}', space=vmem, size = 0x10000, scoped, tag = 'scratch operand']
  %s0 = inlined_call_operand.hbm [shape: f32[128,128], index: 0, kind: input, shape index: {}]
  %s1 = inlined_call_operand.hbm [shape: bf16[128,128], index: 1, kind: input, shape index: {}]
  %s2 = inlined_call_operand.hbm [shape: f32[8,128], index: 2, kind: input, shape index: {}]
  %s3 = inlined_call_operand.hbm [shape: f32[3,128,384], index: 3, kind: input, shape index: {}]
  %s4 = inlined_call_operand.hbm [shape: f32[128,384], index: 4, kind: input, shape index: {}]
  %s5 = inlined_call_operand.vmem [shape: f32[8,128], index: 5, kind: input, shape index: {}]
  %s6 = inlined_call_operand.hbm [shape: f32[8,128], index: 6, kind: output, shape index: {}]
  %s7 = sld [smem:[#allocation0]]
  $region85: #{tpu_custom_call.1} parent=0
    _
  %s9 = ssub.s32 1, %s7
  %s10 = scalar_select 0, %s9, %s7
  $region1: #{tpu_custom_call.1} parent=0
    #allocation3 [shape = 'u8[65536]{0}', space=vmem, size = 0x10000, scoped, tag = 'input window, operand 0, single buffered']
    #allocation4 [shape = 's32[2]{0}', space=sflag, size = 0x8, scoped, tag = 'scoped memory for tpu_custom_call.1']
    #allocation5 [shape = 's32[2]{0}', space=sflag, size = 0x8, scoped, tag = 'scoped memory for tpu_custom_call.1']
    #allocation6 [shape = 'u8[32768]{0}', space=vmem, size = 0x8000, scoped, tag = 'input window, operand 1, single buffered']
    #allocation7 [shape = 's32[1]{0}', space=sflag, size = 0x4, scoped, tag = 'scoped memory for tpu_custom_call.1']
    #allocation8 [shape = 'u8[4096]{0}', space=vmem, size = 0x1000, scoped, tag = 'input window, operand 2, single buffered']
    #allocation9 [shape = 'u8[393216]{0}', space=vmem, size = 0x60000, scoped, tag = 'input window, operand 3']
    #allocation10 [shape = 's32[2]{0}', space=sflag, size = 0x8, scoped, tag = 'scoped memory for tpu_custom_call.1']
    #allocation11 [shape = 'u8[196608]{0}', space=vmem, size = 0x30000, scoped, tag = 'input window, operand 4, single buffered']
    #allocation12 [shape = 'u8[4096]{0}', space=vmem, size = 0x1000, scoped, tag = 'output window, operand 0, single buffered']
    %11 = vsyncpa [#allocation4], 0
    %12 = vsyncpa [#allocation7], 0
    %13 = vsyncpa [#allocation10], 0
    %s14 = scalar_lea.sflag [#allocation10], 1
    %15 = vsyncpa %s14, 0
    %16 = vsyncpa [#allocation5], 0
    loop: start=0, step=1, limit=5
    $region2: #{tpu_custom_call.1} parent=1 // loop_pre_header
      _
    $region3: #{tpu_custom_call.1} parent=1 // loop_header
      %s18 = sphi 0, %s22
      %p19 = scmp.ge.s32.totalorder %s18, 5
      %s26 = sphi 0, %s26
      %s28 = sphi 0, %s26
      %s29 = sphi 0, %s28
      %s43 = sphi 0, %s29
      %s47 = sphi 0, %s47
      %s49 = sphi 0, %s47
      %s50 = sphi 0, %s49
      %s64 = sphi 0, %s50
      %s68 = sphi 0, %s68
      %s70 = sphi 0, %s68
      %s71 = sphi 0, %s70
      %s85 = sphi 0, %s71
      %s91 = sphi 0, %s93
      %s94 = sphi 0, %s91
      %s95 = sphi 0, %s94
      %s111 = sphi 0, %s95
      %s115 = sphi 0, %s115
      %s117 = sphi 0, %s115
      %s118 = sphi 0, %s117
      %s132 = sphi 0, %s118
      %s136 = sphi 0, %s136
      %s138 = sphi 0, %s136
      %s139 = sphi 0, %s138
      %s153 = sphi 0, %s139
      %s157 = sphi 0, %s157
      %s159 = sphi 0, %s157
      %s160 = sphi 0, %s159
      %s174 = sphi 0, %s160
    $region4: #{tpu_custom_call.1} parent=1 // loop_header_branch
      %21 = sbr.rel (%p19) target = $region8
    $region5: #{tpu_custom_call.1} parent=1 // loop_body
      %s23 = ssub.s32 %s18, 1
      %s24 = ssub.s32 %s18, 2
      %s25 = sadd.s32 %s18, 1
      %s27 = sadd.s32 %s26, 1
      %p30 = scmp.eq.s32.totalorder %s18, 2
      %p31 = scmp.ne.s32.totalorder %s26, %s28
      %p32 = scmp.eq.s32.totalorder %s18, 0
      %p33 = por %p31, %p32
      %p34 = scmp.ne.s32.totalorder %s26, %s28
      %p35 = scmp.eq.s32.totalorder %s23, 2
      %p36 = por %p34, %p35
      %p37 = scmp.ne.s32.totalorder %s28, %s29
      %p38 = scmp.eq.s32.totalorder %s23, 0
      %p39 = por %p37, %p38
      %p40 = scmp.ne.s32.totalorder %s28, %s29
      %p41 = scmp.eq.s32.totalorder %s24, 2
      %p42 = por %p40, %p41
      %p44 = scmp.ne.s32.totalorder %s29, %s43
      %p45 = scmp.eq.s32.totalorder %s24, 0
      %p46 = por %p44, %p45
      %s48 = sadd.s32 %s47, 1
      %p51 = scmp.eq.s32.totalorder %s18, 2
      %p52 = scmp.ne.s32.totalorder %s47, %s49
      %p53 = scmp.eq.s32.totalorder %s18, 0
      %p54 = por %p52, %p53
      %p55 = scmp.ne.s32.totalorder %s47, %s49
      %p56 = scmp.eq.s32.totalorder %s23, 2
      %p57 = por %p55, %p56
      %p58 = scmp.ne.s32.totalorder %s49, %s50
      %p59 = scmp.eq.s32.totalorder %s23, 0
      %p60 = por %p58, %p59
      %p61 = scmp.ne.s32.totalorder %s49, %s50
      %p62 = scmp.eq.s32.totalorder %s24, 2
      %p63 = por %p61, %p62
      %p65 = scmp.ne.s32.totalorder %s50, %s64
      %p66 = scmp.eq.s32.totalorder %s24, 0
      %p67 = por %p65, %p66
      %s69 = sadd.s32 %s68, 1
      %p72 = scmp.eq.s32.totalorder %s18, 2
      %p73 = scmp.ne.s32.totalorder %s68, %s70
      %p74 = scmp.eq.s32.totalorder %s18, 0
      %p75 = por %p73, %p74
      %p76 = scmp.ne.s32.totalorder %s68, %s70
      %p77 = scmp.eq.s32.totalorder %s23, 2
      %p78 = por %p76, %p77
      %p79 = scmp.ne.s32.totalorder %s70, %s71
      %p80 = scmp.eq.s32.totalorder %s23, 0
      %p81 = por %p79, %p80
      %p82 = scmp.ne.s32.totalorder %s70, %s71
      %p83 = scmp.eq.s32.totalorder %s24, 2
      %p84 = por %p82, %p83
      %p86 = scmp.ne.s32.totalorder %s71, %s85
      %p87 = scmp.eq.s32.totalorder %s24, 0
      %p88 = por %p86, %p87
      %s89 = ssub.s32 %s18, %s25
      %p90 = scmp.eq.s32.totalorder %s89, 0
      %s92 = sadd.s32 %s91, 1
      %s93 = scalar_select %p90, %s91, %s92
      %p96 = pneg %p90
      %p97 = scmp.eq.s32.totalorder %s18, 2
      %p98 = por %p96, %p97
      %p99 = scmp.ne.s32.totalorder %s91, %s94
      %p100 = scmp.eq.s32.totalorder %s18, 0
      %p101 = por %p99, %p100
      %p102 = scmp.ne.s32.totalorder %s91, %s94
      %p103 = scmp.eq.s32.totalorder %s23, 2
      %p104 = por %p102, %p103
      %p105 = scmp.ne.s32.totalorder %s94, %s95
      %p106 = scmp.eq.s32.totalorder %s23, 0
      %p107 = por %p105, %p106
      %p108 = scmp.ne.s32.totalorder %s94, %s95
      %p109 = scmp.eq.s32.totalorder %s24, 2
      %p110 = por %p108, %p109
      %p112 = scmp.ne.s32.totalorder %s95, %s111
      %p113 = scmp.eq.s32.totalorder %s24, 0
      %p114 = por %p112, %p113
      %s116 = sadd.s32 %s115, 1
      %p119 = scmp.eq.s32.totalorder %s18, 2
      %p120 = scmp.ne.s32.totalorder %s115, %s117
      %p121 = scmp.eq.s32.totalorder %s18, 0
      %p122 = por %p120, %p121
      %p123 = scmp.ne.s32.totalorder %s115, %s117
      %p124 = scmp.eq.s32.totalorder %s23, 2
      %p125 = por %p123, %p124
      %p126 = scmp.ne.s32.totalorder %s117, %s118
      %p127 = scmp.eq.s32.totalorder %s23, 0
      %p128 = por %p126, %p127
      %p129 = scmp.ne.s32.totalorder %s117, %s118
      %p130 = scmp.eq.s32.totalorder %s24, 2
      %p131 = por %p129, %p130
      %p133 = scmp.ne.s32.totalorder %s118, %s132
      %p134 = scmp.eq.s32.totalorder %s24, 0
      %p135 = por %p133, %p134
      %s137 = sadd.s32 %s136, 1
      %p140 = scmp.eq.s32.totalorder %s18, 2
      %p141 = scmp.ne.s32.totalorder %s136, %s138
      %p142 = scmp.eq.s32.totalorder %s18, 0
      %p143 = por %p141, %p142
      %p144 = scmp.ne.s32.totalorder %s136, %s138
      %p145 = scmp.eq.s32.totalorder %s23, 2
      %p146 = por %p144, %p145
      %p147 = scmp.ne.s32.totalorder %s138, %s139
      %p148 = scmp.eq.s32.totalorder %s23, 0
      %p149 = por %p147, %p148
      %p150 = scmp.ne.s32.totalorder %s138, %s139
      %p151 = scmp.eq.s32.totalorder %s24, 2
      %p152 = por %p150, %p151
      %p154 = scmp.ne.s32.totalorder %s139, %s153
      %p155 = scmp.eq.s32.totalorder %s24, 0
      %p156 = por %p154, %p155
      %s158 = sadd.s32 %s157, 1
      %p161 = scmp.eq.s32.totalorder %s18, 2
      %p162 = scmp.ne.s32.totalorder %s157, %s159
      %p163 = scmp.eq.s32.totalorder %s18, 0
      %p164 = por %p162, %p163
      %p165 = scmp.ne.s32.totalorder %s157, %s159
      %p166 = scmp.eq.s32.totalorder %s23, 2
      %p167 = por %p165, %p166
      %p168 = scmp.ne.s32.totalorder %s159, %s160
      %p169 = scmp.eq.s32.totalorder %s23, 0
      %p170 = por %p168, %p169
      %p171 = scmp.ne.s32.totalorder %s159, %s160
      %p172 = scmp.eq.s32.totalorder %s24, 2
      %p173 = por %p171, %p172
      %p175 = scmp.ne.s32.totalorder %s160, %s174
      %p176 = scmp.eq.s32.totalorder %s24, 0
      %p177 = por %p175, %p176
      %p178 = scmp.le.s32.totalorder 1, %s18
      %p179 = scmp.lt.s32.totalorder %s18, 4
      %p180 = pnand %p178, %p179
      %p181 = pneg %p180
      // Predicated region
      $region9: #{tpu_custom_call.1} parent=5 // pred_check
        _
      $region10: #{tpu_custom_call.1} parent=5 // pred_check_branch
        %183 = sbr.rel (%p180) target = $region12
      $region11: #{tpu_custom_call.1} parent=5 // pred_region
        %s184 = ssub.s32 %s18, 1
        // Predicated region
        $region13: #{tpu_custom_call.1} parent=11 // pred_check
          %p185 = pneg %p39
        $region14: #{tpu_custom_call.1} parent=11 // pred_check_branch
          %187 = sbr.rel (%p185) target = $region16
        $region15: #{tpu_custom_call.1} parent=11 // pred_region
          %s189 = ssub.s32 2048, 2048
          %190 = vsyncadd [#allocation4], %s189
          %s191 = sshll.u32 [#allocation3], 4
          %s192 = int_to_ptr.vmem [resolvable:$true] %s191
          %197 = dma.hbm_to_vmem [thread:$0]  %s0, 2048, %s192, [#allocation4], 128, 128, 8
        $region16: #{tpu_custom_call.1} parent=11 // pred_fallthru
          _
        // Predicated region
        $region17: #{tpu_custom_call.1} parent=11 // pred_check
          %p198 = pneg %p60
        $region18: #{tpu_custom_call.1} parent=11 // pred_check_branch
          %200 = sbr.rel (%p198) target = $region20
        $region19: #{tpu_custom_call.1} parent=11 // pred_region
          %s202 = ssub.s32 1024, 1024
          %203 = vsyncadd [#allocation7], %s202
          %s204 = sshll.u32 [#allocation6], 4
          %s205 = int_to_ptr.vmem [resolvable:$true] %s204
          %210 = dma.hbm_to_vmem [thread:$0]  %s1, 1024, %s205, [#allocation7], 64, 64, 4
        $region20: #{tpu_custom_call.1} parent=11 // pred_fallthru
          _
        // Predicated region
        $region21: #{tpu_custom_call.1} parent=11 // pred_check
          %p211 = pneg %p81
        $region22: #{tpu_custom_call.1} parent=11 // pred_check_branch
          %213 = sbr.rel (%p211) target = $region24
        $region23: #{tpu_custom_call.1} parent=11 // pred_region
          %s215 = ssub.s32 128, 128
          %216 = vsyncadd [#allocation7], %s215
          %s218 = sshll.u32 [#allocation8], 4
          %s219 = int_to_ptr.vmem [resolvable:$true] %s218
          %221 = dma.hbm_to_vmem [thread:$0]  %s2, 128, %s219, [#allocation7]
        $region24: #{tpu_custom_call.1} parent=11 // pred_fallthru
          _
        // Predicated region
        $region25: #{tpu_custom_call.1} parent=11 // pred_check
          %p222 = pneg %p128
        $region26: #{tpu_custom_call.1} parent=11 // pred_check_branch
          %224 = sbr.rel (%p222) target = $region28
        $region27: #{tpu_custom_call.1} parent=11 // pred_region
          %s226 = ssub.s32 6144, 6144
          %227 = vsyncadd [#allocation10], %s226
          %s228 = sshll.u32 [#allocation11], 4
          %s229 = int_to_ptr.vmem [resolvable:$true] %s228
          %234 = dma.hbm_to_vmem [thread:$0]  %s4, 6144, %s229, [#allocation10], 384, 384, 24
        $region28: #{tpu_custom_call.1} parent=11 // pred_fallthru
          _
        // Predicated region
        $region29: #{tpu_custom_call.1} parent=11 // pred_check
          %p235 = pneg %p149
        $region30: #{tpu_custom_call.1} parent=11 // pred_check_branch
          %237 = sbr.rel (%p235) target = $region32
        $region31: #{tpu_custom_call.1} parent=11 // pred_region
          _
        $region32: #{tpu_custom_call.1} parent=11 // pred_fallthru
          _
      $region12: #{tpu_custom_call.1} parent=5 // pred_fallthru
        _
      %p238 = scmp.lt.s32.totalorder %s18, 3
      // Predicated region
      $region33: #{tpu_custom_call.1} parent=5 // pred_check
        %p239 = pneg %p238
      $region34: #{tpu_custom_call.1} parent=5 // pred_check_branch
        %241 = sbr.rel (%p239) target = $region36
      $region35: #{tpu_custom_call.1} parent=5 // pred_region
        // Predicated region
        $region37: #{tpu_custom_call.1} parent=35 // pred_check
          %p242 = pneg %p101
        $region38: #{tpu_custom_call.1} parent=35 // pred_check_branch
          %244 = sbr.rel (%p242) target = $region40
        $region39: #{tpu_custom_call.1} parent=35 // pred_region
          %s245 = sand.u32 %s18, 1
          %s246 = scalar_lea.sflag [#allocation10], %s245
          %s247 = sand.u32 %s91, 1
          %s248 = smul.addr %s247, 384
          %s249 = scalar_lea.vmem [#allocation9], %s248
          %s251 = ssub.s32 6144, 6144
          %252 = vsyncadd %s246, %s251
          %s253 = smul.addr %s18, 48
          %s254 = smul.addr %s253, 128
          %s255 = scalar_lea.hbm %s3, %s254
          %s256 = sshll.u32 %s249, 4
          %s257 = int_to_ptr.vmem [resolvable:$true] %s256
          %262 = dma.hbm_to_vmem [thread:$0]  %s255, 6144, %s257, %s246, 384, 384, 24
        $region40: #{tpu_custom_call.1} parent=35 // pred_fallthru
          _
      $region36: #{tpu_custom_call.1} parent=5 // pred_fallthru
        _
      %p263 = scmp.le.s32.totalorder 1, %s18
      %p264 = scmp.lt.s32.totalorder %s18, 4
      %p265 = pnand %p263, %p264
      %p266 = pneg %p265
      // Predicated region
      $region41: #{tpu_custom_call.1} parent=5 // pred_check
        _
      $region42: #{tpu_custom_call.1} parent=5 // pred_check_branch
        %268 = sbr.rel (%p265) target = $region44
      $region43: #{tpu_custom_call.1} parent=5 // pred_region
        %s269 = ssub.s32 %s18, 1
        // Predicated region
        $region45: #{tpu_custom_call.1} parent=43 // pred_check
          %p270 = pneg %p39
        $region46: #{tpu_custom_call.1} parent=43 // pred_check_branch
          %272 = sbr.rel (%p270) target = $region48
        $region47: #{tpu_custom_call.1} parent=43 // pred_region
          %273 = dma.done [#allocation4], 2048
        $region48: #{tpu_custom_call.1} parent=43 // pred_fallthru
          _
        // Predicated region
        $region49: #{tpu_custom_call.1} parent=43 // pred_check
          %p274 = pneg %p60
        $region50: #{tpu_custom_call.1} parent=43 // pred_check_branch
          %276 = sbr.rel (%p274) target = $region52
        $region51: #{tpu_custom_call.1} parent=43 // pred_region
          %277 = dma.done [#allocation7], 1024
        $region52: #{tpu_custom_call.1} parent=43 // pred_fallthru
          _
        // Predicated region
        $region53: #{tpu_custom_call.1} parent=43 // pred_check
          %p278 = pneg %p81
        $region54: #{tpu_custom_call.1} parent=43 // pred_check_branch
          %280 = sbr.rel (%p278) target = $region56
        $region55: #{tpu_custom_call.1} parent=43 // pred_region
          %281 = dma.done [#allocation7], 128
        $region56: #{tpu_custom_call.1} parent=43 // pred_fallthru
          _
        %s282 = sand.u32 %s23, 1
        %s283 = scalar_lea.sflag [#allocation10], %s282
        %s284 = sand.u32 %s94, 1
        %s285 = smul.addr %s284, 384
        %s286 = scalar_lea.vmem [#allocation9], %s285
        // Predicated region
        $region57: #{tpu_custom_call.1} parent=43 // pred_check
          %p287 = pneg %p107
        $region58: #{tpu_custom_call.1} parent=43 // pred_check_branch
          %289 = sbr.rel (%p287) target = $region60
        $region59: #{tpu_custom_call.1} parent=43 // pred_region
          %290 = dma.done %s283, 6144
        $region60: #{tpu_custom_call.1} parent=43 // pred_fallthru
          _
        // Predicated region
        $region61: #{tpu_custom_call.1} parent=43 // pred_check
          %p291 = pneg %p128
        $region62: #{tpu_custom_call.1} parent=43 // pred_check_branch
          %293 = sbr.rel (%p291) target = $region64
        $region63: #{tpu_custom_call.1} parent=43 // pred_region
          %294 = dma.done [#allocation10], 6144
        $region64: #{tpu_custom_call.1} parent=43 // pred_fallthru
          _
        %p295 = pneg %p39
        %p296 = pneg %p36
        %p297 = pneg %p60
        %p298 = pneg %p57
        %p299 = pneg %p81
        %p300 = pneg %p78
        %s301 = sand.u32 %s23, 1
        %s302 = scalar_lea.sflag [#allocation10], %s301
        %s303 = sand.u32 %s94, 1
        %s304 = smul.addr %s303, 384
        %s305 = scalar_lea.vmem [#allocation9], %s304
        %p306 = pneg %p107
        %p307 = pneg %p104
        %p308 = pneg %p128
        %p309 = pneg %p125
        %p310 = pneg %p149
        %p311 = pneg %p146
        %p312 = pneg %p170
        %p313 = pneg %p167
        %p314 = scmp.eq.s32.totalorder %s23, 0
        // Predicated region
        $region65: #{tpu_custom_call.1} parent=43 // pred_check
          %p315 = pneg %p314
        $region66: #{tpu_custom_call.1} parent=43 // pred_check_branch
          %317 = sbr.rel (%p315) target = $region68
        $region67: #{tpu_custom_call.1} parent=43 // pred_region
          %v318 = vld [vmem:[#allocation3] sm:$0xff]
          %v319 = vld [vmem:[#allocation3 + $0x8] sm:$0xff]
          %v320 = vld [vmem:[#allocation3 + $0x10] sm:$0xff]
          %v321 = vld [vmem:[#allocation3 + $0x18] sm:$0xff]
          %v322 = vld [vmem:[#allocation3 + $0x20] sm:$0xff]
          %v323 = vld [vmem:[#allocation3 + $0x28] sm:$0xff]
          %v324 = vld [vmem:[#allocation3 + $0x30] sm:$0xff]
          %v325 = vld [vmem:[#allocation3 + $0x38] sm:$0xff]
          %v326 = vld [vmem:[#allocation3 + $0x40] sm:$0xff]
          %v327 = vld [vmem:[#allocation3 + $0x48] sm:$0xff]
          %v328 = vld [vmem:[#allocation3 + $0x50] sm:$0xff]
          %v329 = vld [vmem:[#allocation3 + $0x58] sm:$0xff]
          %v330 = vld [vmem:[#allocation3 + $0x60] sm:$0xff]
          %v331 = vld [vmem:[#allocation3 + $0x68] sm:$0xff]
          %v332 = vld [vmem:[#allocation3 + $0x70] sm:$0xff]
          %v333 = vld [vmem:[#allocation3 + $0x78] sm:$0xff]
          %334 = vst [vmem:[#allocation2] sm:$0xff] %v318
          %335 = vst [vmem:[#allocation2 + $0x8] sm:$0xff] %v319
          %336 = vst [vmem:[#allocation2 + $0x10] sm:$0xff] %v320
          %337 = vst [vmem:[#allocation2 + $0x18] sm:$0xff] %v321
          %338 = vst [vmem:[#allocation2 + $0x20] sm:$0xff] %v322
          %339 = vst [vmem:[#allocation2 + $0x28] sm:$0xff] %v323
          %340 = vst [vmem:[#allocation2 + $0x30] sm:$0xff] %v324
          %341 = vst [vmem:[#allocation2 + $0x38] sm:$0xff] %v325
          %342 = vst [vmem:[#allocation2 + $0x40] sm:$0xff] %v326
          %343 = vst [vmem:[#allocation2 + $0x48] sm:$0xff] %v327
          %344 = vst [vmem:[#allocation2 + $0x50] sm:$0xff] %v328
          %345 = vst [vmem:[#allocation2 + $0x58] sm:$0xff] %v329
          %346 = vst [vmem:[#allocation2 + $0x60] sm:$0xff] %v330
          %347 = vst [vmem:[#allocation2 + $0x68] sm:$0xff] %v331
          %348 = vst [vmem:[#allocation2 + $0x70] sm:$0xff] %v332
          %349 = vst [vmem:[#allocation2 + $0x78] sm:$0xff] %v333
        $region68: #{tpu_custom_call.1} parent=43 // pred_fallthru
          _
        %v350 = vld [vmem:[#allocation2] sm:$0xff]
        %v351 = vld [vmem:[#allocation2 + $0x8] sm:$0xff]
        %v352 = vld [vmem:[#allocation2 + $0x10] sm:$0xff]
        %v353 = vld [vmem:[#allocation2 + $0x18] sm:$0xff]
        %v354 = vld [vmem:[#allocation2 + $0x20] sm:$0xff]
        %v355 = vld [vmem:[#allocation2 + $0x28] sm:$0xff]
        %v356 = vld [vmem:[#allocation2 + $0x30] sm:$0xff]
        %v357 = vld [vmem:[#allocation2 + $0x38] sm:$0xff]
        %v358 = vld [vmem:[#allocation2 + $0x40] sm:$0xff]
        %v359 = vld [vmem:[#allocation2 + $0x48] sm:$0xff]
        %v360 = vld [vmem:[#allocation2 + $0x50] sm:$0xff]
        %v361 = vld [vmem:[#allocation2 + $0x58] sm:$0xff]
        %v362 = vld [vmem:[#allocation2 + $0x60] sm:$0xff]
        %v363 = vld [vmem:[#allocation2 + $0x68] sm:$0xff]
        %v364 = vld [vmem:[#allocation2 + $0x70] sm:$0xff]
        %v365 = vld [vmem:[#allocation2 + $0x78] sm:$0xff]
        %v366 = vld [vmem:[#allocation6] sm:$0xf]
        %v367 = vld [vmem:[#allocation6 + $0x4] sm:$0xf]
        %v368 = vld [vmem:[#allocation6 + $0x8] sm:$0xf]
        %v369 = vld [vmem:[#allocation6 + $0xc] sm:$0xf]
        %v370 = vld [vmem:[#allocation6 + $0x10] sm:$0xf]
        %v371 = vld [vmem:[#allocation6 + $0x14] sm:$0xf]
        %v372 = vld [vmem:[#allocation6 + $0x18] sm:$0xf]
        %v373 = vld [vmem:[#allocation6 + $0x1c] sm:$0xf]
        %v374 = vld [vmem:[#allocation6 + $0x20] sm:$0xf]
        %v375 = vld [vmem:[#allocation6 + $0x24] sm:$0xf]
        %v376 = vld [vmem:[#allocation6 + $0x28] sm:$0xf]
        %v377 = vld [vmem:[#allocation6 + $0x2c] sm:$0xf]
        %v378 = vld [vmem:[#allocation6 + $0x30] sm:$0xf]
        %v379 = vld [vmem:[#allocation6 + $0x34] sm:$0xf]
        %v380 = vld [vmem:[#allocation6 + $0x38] sm:$0xf]
        %v381 = vld [vmem:[#allocation6 + $0x3c] sm:$0xf]
        %v382 = vunpack.c.l.bf16 %v366
        %v383 = vunpack.c.l.bf16 %v367
        %v384 = vunpack.c.l.bf16 %v368
        %v385 = vunpack.c.l.bf16 %v369
        %v386 = vunpack.c.l.bf16 %v370
        %v387 = vunpack.c.l.bf16 %v371
        %v388 = vunpack.c.l.bf16 %v372
        %v389 = vunpack.c.l.bf16 %v373
        %v390 = vunpack.c.l.bf16 %v374
        %v391 = vunpack.c.l.bf16 %v375
        %v392 = vunpack.c.l.bf16 %v376
        %v393 = vunpack.c.l.bf16 %v377
        %v394 = vunpack.c.l.bf16 %v378
        %v395 = vunpack.c.l.bf16 %v379
        %v396 = vunpack.c.l.bf16 %v380
        %v397 = vunpack.c.l.bf16 %v381
        %398 = vmatprep.subr.mxu0 0.0
        %399 = vmatpush1.msra.mxu0 %v365
        %400 = vmatprep.subr.mxu0 0.0
        %401 = vmatpush1.msra.mxu0 %v364
        %402 = vmatprep.subr.mxu0 0.0
        %403 = vmatpush1.msra.mxu0 %v363
        %404 = vmatprep.subr.mxu0 0.0
        %405 = vmatpush1.msra.mxu0 %v362
        %406 = vmatprep.subr.mxu0 0.0
        %407 = vmatpush1.msra.mxu0 %v361
        %408 = vmatprep.subr.mxu0 0.0
        %409 = vmatpush1.msra.mxu0 %v360
        %410 = vmatprep.subr.mxu0 0.0
        %411 = vmatpush1.msra.mxu0 %v359
        %412 = vmatprep.subr.mxu0 0.0
        %413 = vmatpush1.msra.mxu0 %v358
        %414 = vmatprep.subr.mxu0 0.0
        %415 = vmatpush1.msra.mxu0 %v357
        %416 = vmatprep.subr.mxu0 0.0
        %417 = vmatpush1.msra.mxu0 %v356
        %418 = vmatprep.subr.mxu0 0.0
        %419 = vmatpush1.msra.mxu0 %v355
        %420 = vmatprep.subr.mxu0 0.0
        %421 = vmatpush1.msra.mxu0 %v354
        %422 = vmatprep.subr.mxu0 0.0
        %423 = vmatpush1.msra.mxu0 %v353
        %424 = vmatprep.subr.mxu0 0.0
        %425 = vmatpush1.msra.mxu0 %v352
        %426 = vmatprep.subr.mxu0 0.0
        %427 = vmatpush1.msra.mxu0 %v351
        %428 = vmatprep.subr.mxu0 0.0
        %429 = vmatpush1.msra.mxu0 %v350
        %430 = vmatprep.subr.mxu0 0.0
        %431 = vmatpush2.msra.mxu0 0.0
        %432 = vmatprep.subr.mxu0 0.0
        %433 = vmatpush2.msra.mxu0 0.0
        %434 = vmatprep.subr.mxu0 0.0
        %435 = vmatpush2.msra.mxu0 0.0
        %436 = vmatprep.subr.mxu0 0.0
        %437 = vmatpush2.msra.mxu0 0.0
        %438 = vmatprep.subr.mxu0 0.0
        %439 = vmatpush2.msra.mxu0 0.0
        %440 = vmatprep.subr.mxu0 0.0
        %441 = vmatpush2.msra.mxu0 0.0
        %442 = vmatprep.subr.mxu0 0.0
        %443 = vmatpush2.msra.mxu0 0.0
        %444 = vmatprep.subr.mxu0 0.0
        %445 = vmatpush2.msra.mxu0 0.0
        %446 = vmatprep.subr.mxu0 0.0
        %447 = vmatpush2.msra.mxu0 0.0
        %448 = vmatprep.subr.mxu0 0.0
        %449 = vmatpush2.msra.mxu0 0.0
        %450 = vmatprep.subr.mxu0 0.0
        %451 = vmatpush2.msra.mxu0 0.0
        %452 = vmatprep.subr.mxu0 0.0
        %453 = vmatpush2.msra.mxu0 0.0
        %454 = vmatprep.subr.mxu0 0.0
        %455 = vmatpush2.msra.mxu0 0.0
        %456 = vmatprep.subr.mxu0 0.0
        %457 = vmatpush2.msra.mxu0 0.0
        %458 = vmatprep.subr.mxu0 0.0
        %459 = vmatpush2.msra.mxu0 0.0
        %460 = vmatprep.subr.mxu0 0.0
        %461 = vmatpush2.msra.mxu0 0.0
        %462 = vmatprep.mubr.f32.mxu0 0.0
        %463 = vmatmul.mubr.f32.gmra.mxu0 %v382
        %v464 = vpop.f32.mrf.mxu0
        %v465 = vadd.f32 0.0, %v464
        %v466 = vpop.f32.mrf.mxu0
        %467 = vmatprep.mubr.f32.mxu0 0.0
        %468 = vmatmul.mubr.f32.gmra.mxu0 %v383
        %v469 = vpop.f32.mrf.mxu0
        %v470 = vadd.f32 0.0, %v469
        %v471 = vpop.f32.mrf.mxu0
        %472 = vmatprep.mubr.f32.mxu0 0.0
        %473 = vmatmul.mubr.f32.gmra.mxu0 %v384
        %v474 = vpop.f32.mrf.mxu0
        %v475 = vadd.f32 0.0, %v474
        %v476 = vpop.f32.mrf.mxu0
        %477 = vmatprep.mubr.f32.mxu0 0.0
        %478 = vmatmul.mubr.f32.gmra.mxu0 %v385
        %v479 = vpop.f32.mrf.mxu0
        %v480 = vadd.f32 0.0, %v479
        %v481 = vpop.f32.mrf.mxu0
        %482 = vmatprep.mubr.f32.mxu0 0.0
        %483 = vmatmul.mubr.f32.gmra.mxu0 %v386
        %v484 = vpop.f32.mrf.mxu0
        %v485 = vadd.f32 0.0, %v484
        %v486 = vpop.f32.mrf.mxu0
        %487 = vmatprep.mubr.f32.mxu0 0.0
        %488 = vmatmul.mubr.f32.gmra.mxu0 %v387
        %v489 = vpop.f32.mrf.mxu0
        %v490 = vadd.f32 0.0, %v489
        %v491 = vpop.f32.mrf.mxu0
        %492 = vmatprep.mubr.f32.mxu0 0.0
        %493 = vmatmul.mubr.f32.gmra.mxu0 %v388
        %v494 = vpop.f32.mrf.mxu0
        %v495 = vadd.f32 0.0, %v494
        %v496 = vpop.f32.mrf.mxu0
        %497 = vmatprep.mubr.f32.mxu0 0.0
        %498 = vmatmul.mubr.f32.gmra.mxu0 %v389
        %v499 = vpop.f32.mrf.mxu0
        %v500 = vadd.f32 0.0, %v499
        %v501 = vpop.f32.mrf.mxu0
        %502 = vmatprep.mubr.f32.mxu0 0.0
        %503 = vmatmul.mubr.f32.gmra.mxu0 %v390
        %v504 = vpop.f32.mrf.mxu0
        %v505 = vadd.f32 0.0, %v504
        %v506 = vpop.f32.mrf.mxu0
        %507 = vmatprep.mubr.f32.mxu0 0.0
        %508 = vmatmul.mubr.f32.gmra.mxu0 %v391
        %v509 = vpop.f32.mrf.mxu0
        %v510 = vadd.f32 0.0, %v509
        %v511 = vpop.f32.mrf.mxu0
        %512 = vmatprep.mubr.f32.mxu0 0.0
        %513 = vmatmul.mubr.f32.gmra.mxu0 %v392
        %v514 = vpop.f32.mrf.mxu0
        %v515 = vadd.f32 0.0, %v514
        %v516 = vpop.f32.mrf.mxu0
        %517 = vmatprep.mubr.f32.mxu0 0.0
        %518 = vmatmul.mubr.f32.gmra.mxu0 %v393
        %v519 = vpop.f32.mrf.mxu0
        %v520 = vadd.f32 0.0, %v519
        %v521 = vpop.f32.mrf.mxu0
        %522 = vmatprep.mubr.f32.mxu0 0.0
        %523 = vmatmul.mubr.f32.gmra.mxu0 %v394
        %v524 = vpop.f32.mrf.mxu0
        %v525 = vadd.f32 0.0, %v524
        %v526 = vpop.f32.mrf.mxu0
        %527 = vmatprep.mubr.f32.mxu0 0.0
        %528 = vmatmul.mubr.f32.gmra.mxu0 %v395
        %v529 = vpop.f32.mrf.mxu0
        %v530 = vadd.f32 0.0, %v529
        %v531 = vpop.f32.mrf.mxu0
        %532 = vmatprep.mubr.f32.mxu0 0.0
        %533 = vmatmul.mubr.f32.gmra.mxu0 %v396
        %v534 = vpop.f32.mrf.mxu0
        %v535 = vadd.f32 0.0, %v534
        %v536 = vpop.f32.mrf.mxu0
        %537 = vmatprep.mubr.f32.mxu0 0.0
        %538 = vmatmul.mubr.f32.gmra.mxu0 %v397
        %v539 = vpop.f32.mrf.mxu0
        %v540 = vadd.f32 0.0, %v539
        %v541 = vpop.f32.mrf.mxu0
        %542 = vdwg.mxu0
        %v543 = vld [vmem:[%s286] sm:$0xff]
        %v544 = vld [vmem:[%s286 + $0x8] sm:$0xff]
        %v545 = vld [vmem:[%s286 + $0x10] sm:$0xff]
        %v546 = vld [vmem:[%s286 + $0x18] sm:$0xff]
        %v547 = vld [vmem:[%s286 + $0x20] sm:$0xff]
        %v548 = vld [vmem:[%s286 + $0x28] sm:$0xff]
        %v549 = vld [vmem:[%s286 + $0x30] sm:$0xff]
        %v550 = vld [vmem:[%s286 + $0x38] sm:$0xff]
        %v551 = vld [vmem:[%s286 + $0x40] sm:$0xff]
        %v552 = vld [vmem:[%s286 + $0x48] sm:$0xff]
        %v553 = vld [vmem:[%s286 + $0x50] sm:$0xff]
        %v554 = vld [vmem:[%s286 + $0x58] sm:$0xff]
        %v555 = vld [vmem:[%s286 + $0x60] sm:$0xff]
        %v556 = vld [vmem:[%s286 + $0x68] sm:$0xff]
        %v557 = vld [vmem:[%s286 + $0x70] sm:$0xff]
        %v558 = vld [vmem:[%s286 + $0x78] sm:$0xff]
        %v559 = vld [vmem:[%s286 + $0x80] sm:$0xff]
        %v560 = vld [vmem:[%s286 + $0x88] sm:$0xff]
        %v561 = vld [vmem:[%s286 + $0x90] sm:$0xff]
        %v562 = vld [vmem:[%s286 + $0x98] sm:$0xff]
        %v563 = vld [vmem:[%s286 + $0xa0] sm:$0xff]
        %v564 = vld [vmem:[%s286 + $0xa8] sm:$0xff]
        %v565 = vld [vmem:[%s286 + $0xb0] sm:$0xff]
        %v566 = vld [vmem:[%s286 + $0xb8] sm:$0xff]
        %v567 = vld [vmem:[%s286 + $0xc0] sm:$0xff]
        %v568 = vld [vmem:[%s286 + $0xc8] sm:$0xff]
        %v569 = vld [vmem:[%s286 + $0xd0] sm:$0xff]
        %v570 = vld [vmem:[%s286 + $0xd8] sm:$0xff]
        %v571 = vld [vmem:[%s286 + $0xe0] sm:$0xff]
        %v572 = vld [vmem:[%s286 + $0xe8] sm:$0xff]
        %v573 = vld [vmem:[%s286 + $0xf0] sm:$0xff]
        %v574 = vld [vmem:[%s286 + $0xf8] sm:$0xff]
        %v575 = vld [vmem:[%s286 + $0x100] sm:$0xff]
        %v576 = vld [vmem:[%s286 + $0x108] sm:$0xff]
        %v577 = vld [vmem:[%s286 + $0x110] sm:$0xff]
        %v578 = vld [vmem:[%s286 + $0x118] sm:$0xff]
        %v579 = vld [vmem:[%s286 + $0x120] sm:$0xff]
        %v580 = vld [vmem:[%s286 + $0x128] sm:$0xff]
        %v581 = vld [vmem:[%s286 + $0x130] sm:$0xff]
        %v582 = vld [vmem:[%s286 + $0x138] sm:$0xff]
        %v583 = vld [vmem:[%s286 + $0x140] sm:$0xff]
        %v584 = vld [vmem:[%s286 + $0x148] sm:$0xff]
        %v585 = vld [vmem:[%s286 + $0x150] sm:$0xff]
        %v586 = vld [vmem:[%s286 + $0x158] sm:$0xff]
        %v587 = vld [vmem:[%s286 + $0x160] sm:$0xff]
        %v588 = vld [vmem:[%s286 + $0x168] sm:$0xff]
        %v589 = vld [vmem:[%s286 + $0x170] sm:$0xff]
        %v590 = vld [vmem:[%s286 + $0x178] sm:$0xff]
        %591 = vmatprep.subr.mxu0 %v589
        %592 = vmatpush1.msra.mxu0 %v588
        %593 = vmatprep.subr.mxu0 %v586
        %594 = vmatpush1.msra.mxu0 %v585
        %595 = vmatprep.subr.mxu0 %v583
        %596 = vmatpush1.msra.mxu0 %v582
        %597 = vmatprep.subr.mxu0 %v580
        %598 = vmatpush1.msra.mxu0 %v579
        %599 = vmatprep.subr.mxu0 %v577
        %600 = vmatpush1.msra.mxu0 %v576
        %601 = vmatprep.subr.mxu0 %v574
        %602 = vmatpush1.msra.mxu0 %v573
        %603 = vmatprep.subr.mxu0 %v571
        %604 = vmatpush1.msra.mxu0 %v570
        %605 = vmatprep.subr.mxu0 %v568
        %606 = vmatpush1.msra.mxu0 %v567
        %607 = vmatprep.subr.mxu0 %v565
        %608 = vmatpush1.msra.mxu0 %v564
        %609 = vmatprep.subr.mxu0 %v562
        %610 = vmatpush1.msra.mxu0 %v561
        %611 = vmatprep.subr.mxu0 %v559
        %612 = vmatpush1.msra.mxu0 %v558
        %613 = vmatprep.subr.mxu0 %v556
        %614 = vmatpush1.msra.mxu0 %v555
        %615 = vmatprep.subr.mxu0 %v553
        %616 = vmatpush1.msra.mxu0 %v552
        %617 = vmatprep.subr.mxu0 %v550
        %618 = vmatpush1.msra.mxu0 %v549
        %619 = vmatprep.subr.mxu0 %v547
        %620 = vmatpush1.msra.mxu0 %v546
        %621 = vmatprep.subr.mxu0 %v544
        %622 = vmatpush1.msra.mxu0 %v543
        %623 = vmatprep.subr.mxu0 0.0
        %624 = vmatpush2.msra.mxu0 0.0
        %625 = vmatprep.subr.mxu0 0.0
        %626 = vmatpush2.msra.mxu0 0.0
        %627 = vmatprep.subr.mxu0 0.0
        %628 = vmatpush2.msra.mxu0 0.0
        %629 = vmatprep.subr.mxu0 0.0
        %630 = vmatpush2.msra.mxu0 0.0
        %631 = vmatprep.subr.mxu0 0.0
        %632 = vmatpush2.msra.mxu0 0.0
        %633 = vmatprep.subr.mxu0 0.0
        %634 = vmatpush2.msra.mxu0 0.0
        %635 = vmatprep.subr.mxu0 0.0
        %636 = vmatpush2.msra.mxu0 0.0
        %637 = vmatprep.subr.mxu0 0.0
        %638 = vmatpush2.msra.mxu0 0.0
        %639 = vmatprep.subr.mxu0 0.0
        %640 = vmatpush2.msra.mxu0 0.0
        %641 = vmatprep.subr.mxu0 0.0
        %642 = vmatpush2.msra.mxu0 0.0
        %643 = vmatprep.subr.mxu0 0.0
        %644 = vmatpush2.msra.mxu0 0.0
        %645 = vmatprep.subr.mxu0 0.0
        %646 = vmatpush2.msra.mxu0 0.0
        %647 = vmatprep.subr.mxu0 0.0
        %648 = vmatpush2.msra.mxu0 0.0
        %649 = vmatprep.subr.mxu0 0.0
        %650 = vmatpush2.msra.mxu0 0.0
        %651 = vmatprep.subr.mxu0 0.0
        %652 = vmatpush2.msra.mxu0 0.0
        %653 = vmatprep.subr.mxu0 0.0
        %654 = vmatpush2.msra.mxu0 0.0
        %655 = vmatprep.mubr.f32.mxu0 0.0
        %656 = vmatmul.mubr.f32.gmra.mxu0 %v465
        %v657 = vpop.f32.mrf.mxu0
        %v658 = vadd.f32 0.0, %v657
        %v659 = vpop.f32.mrf.mxu0
        %v660 = vadd.f32 0.0, %v659
        %661 = vmatprep.mubr.f32.mxu0 0.0
        %662 = vmatmul.mubr.f32.gmra.mxu0 %v470
        %v663 = vpop.f32.mrf.mxu0
        %v664 = vadd.f32 0.0, %v663
        %v665 = vpop.f32.mrf.mxu0
        %v666 = vadd.f32 0.0, %v665
        %667 = vmatprep.mubr.f32.mxu0 0.0
        %668 = vmatmul.mubr.f32.gmra.mxu0 %v475
        %v669 = vpop.f32.mrf.mxu0
        %v670 = vadd.f32 0.0, %v669
        %v671 = vpop.f32.mrf.mxu0
        %v672 = vadd.f32 0.0, %v671
        %673 = vmatprep.mubr.f32.mxu0 0.0
        %674 = vmatmul.mubr.f32.gmra.mxu0 %v480
        %v675 = vpop.f32.mrf.mxu0
        %v676 = vadd.f32 0.0, %v675
        %v677 = vpop.f32.mrf.mxu0
        %v678 = vadd.f32 0.0, %v677
        %679 = vmatprep.mubr.f32.mxu0 0.0
        %680 = vmatmul.mubr.f32.gmra.mxu0 %v485
        %v681 = vpop.f32.mrf.mxu0
        %v682 = vadd.f32 0.0, %v681
        %v683 = vpop.f32.mrf.mxu0
        %v684 = vadd.f32 0.0, %v683
        %685 = vmatprep.mubr.f32.mxu0 0.0
        %686 = vmatmul.mubr.f32.gmra.mxu0 %v490
        %v687 = vpop.f32.mrf.mxu0
        %v688 = vadd.f32 0.0, %v687
        %v689 = vpop.f32.mrf.mxu0
        %v690 = vadd.f32 0.0, %v689
        %691 = vmatprep.mubr.f32.mxu0 0.0
        %692 = vmatmul.mubr.f32.gmra.mxu0 %v495
        %v693 = vpop.f32.mrf.mxu0
        %v694 = vadd.f32 0.0, %v693
        %v695 = vpop.f32.mrf.mxu0
        %v696 = vadd.f32 0.0, %v695
        %697 = vmatprep.mubr.f32.mxu0 0.0
        %698 = vmatmul.mubr.f32.gmra.mxu0 %v500
        %v699 = vpop.f32.mrf.mxu0
        %v700 = vadd.f32 0.0, %v699
        %v701 = vpop.f32.mrf.mxu0
        %v702 = vadd.f32 0.0, %v701
        %703 = vmatprep.mubr.f32.mxu0 0.0
        %704 = vmatmul.mubr.f32.gmra.mxu0 %v505
        %v705 = vpop.f32.mrf.mxu0
        %v706 = vadd.f32 0.0, %v705
        %v707 = vpop.f32.mrf.mxu0
        %v708 = vadd.f32 0.0, %v707
        %709 = vmatprep.mubr.f32.mxu0 0.0
        %710 = vmatmul.mubr.f32.gmra.mxu0 %v510
        %v711 = vpop.f32.mrf.mxu0
        %v712 = vadd.f32 0.0, %v711
        %v713 = vpop.f32.mrf.mxu0
        %v714 = vadd.f32 0.0, %v713
        %715 = vmatprep.mubr.f32.mxu0 0.0
        %716 = vmatmul.mubr.f32.gmra.mxu0 %v515
        %v717 = vpop.f32.mrf.mxu0
        %v718 = vadd.f32 0.0, %v717
        %v719 = vpop.f32.mrf.mxu0
        %v720 = vadd.f32 0.0, %v719
        %721 = vmatprep.mubr.f32.mxu0 0.0
        %722 = vmatmul.mubr.f32.gmra.mxu0 %v520
        %v723 = vpop.f32.mrf.mxu0
        %v724 = vadd.f32 0.0, %v723
        %v725 = vpop.f32.mrf.mxu0
        %v726 = vadd.f32 0.0, %v725
        %727 = vmatprep.mubr.f32.mxu0 0.0
        %728 = vmatmul.mubr.f32.gmra.mxu0 %v525
        %v729 = vpop.f32.mrf.mxu0
        %v730 = vadd.f32 0.0, %v729
        %v731 = vpop.f32.mrf.mxu0
        %v732 = vadd.f32 0.0, %v731
        %733 = vmatprep.mubr.f32.mxu0 0.0
        %734 = vmatmul.mubr.f32.gmra.mxu0 %v530
        %v735 = vpop.f32.mrf.mxu0
        %v736 = vadd.f32 0.0, %v735
        %v737 = vpop.f32.mrf.mxu0
        %v738 = vadd.f32 0.0, %v737
        %739 = vmatprep.mubr.f32.mxu0 0.0
        %740 = vmatmul.mubr.f32.gmra.mxu0 %v535
        %v741 = vpop.f32.mrf.mxu0
        %v742 = vadd.f32 0.0, %v741
        %v743 = vpop.f32.mrf.mxu0
        %v744 = vadd.f32 0.0, %v743
        %745 = vmatprep.mubr.f32.mxu0 0.0
        %746 = vmatmul.mubr.f32.gmra.mxu0 %v540
        %v747 = vpop.f32.mrf.mxu0
        %v748 = vadd.f32 0.0, %v747
        %v749 = vpop.f32.mrf.mxu0
        %v750 = vadd.f32 0.0, %v749
        %751 = vdwg.mxu0
        %752 = vmatprep.subr.mxu0 0.0
        %753 = vmatpush1.msra.mxu0 %v590
        %754 = vmatprep.subr.mxu0 0.0
        %755 = vmatpush1.msra.mxu0 %v587
        %756 = vmatprep.subr.mxu0 0.0
        %757 = vmatpush1.msra.mxu0 %v584
        %758 = vmatprep.subr.mxu0 0.0
        %759 = vmatpush1.msra.mxu0 %v581
        %760 = vmatprep.subr.mxu0 0.0
        %761 = vmatpush1.msra.mxu0 %v578
        %762 = vmatprep.subr.mxu0 0.0
        %763 = vmatpush1.msra.mxu0 %v575
        %764 = vmatprep.subr.mxu0 0.0
        %765 = vmatpush1.msra.mxu0 %v572
        %766 = vmatprep.subr.mxu0 0.0
        %767 = vmatpush1.msra.mxu0 %v569
        %768 = vmatprep.subr.mxu0 0.0
        %769 = vmatpush1.msra.mxu0 %v566
        %770 = vmatprep.subr.mxu0 0.0
        %771 = vmatpush1.msra.mxu0 %v563
        %772 = vmatprep.subr.mxu0 0.0
        %773 = vmatpush1.msra.mxu0 %v560
        %774 = vmatprep.subr.mxu0 0.0
        %775 = vmatpush1.msra.mxu0 %v557
        %776 = vmatprep.subr.mxu0 0.0
        %777 = vmatpush1.msra.mxu0 %v554
        %778 = vmatprep.subr.mxu0 0.0
        %779 = vmatpush1.msra.mxu0 %v551
        %780 = vmatprep.subr.mxu0 0.0
        %781 = vmatpush1.msra.mxu0 %v548
        %782 = vmatprep.subr.mxu0 0.0
        %783 = vmatpush1.msra.mxu0 %v545
        %784 = vmatprep.subr.mxu0 0.0
        %785 = vmatpush2.msra.mxu0 0.0
        %786 = vmatprep.subr.mxu0 0.0
        %787 = vmatpush2.msra.mxu0 0.0
        %788 = vmatprep.subr.mxu0 0.0
        %789 = vmatpush2.msra.mxu0 0.0
        %790 = vmatprep.subr.mxu0 0.0
        %791 = vmatpush2.msra.mxu0 0.0
        %792 = vmatprep.subr.mxu0 0.0
        %793 = vmatpush2.msra.mxu0 0.0
        %794 = vmatprep.subr.mxu0 0.0
        %795 = vmatpush2.msra.mxu0 0.0
        %796 = vmatprep.subr.mxu0 0.0
        %797 = vmatpush2.msra.mxu0 0.0
        %798 = vmatprep.subr.mxu0 0.0
        %799 = vmatpush2.msra.mxu0 0.0
        %800 = vmatprep.subr.mxu0 0.0
        %801 = vmatpush2.msra.mxu0 0.0
        %802 = vmatprep.subr.mxu0 0.0
        %803 = vmatpush2.msra.mxu0 0.0
        %804 = vmatprep.subr.mxu0 0.0
        %805 = vmatpush2.msra.mxu0 0.0
        %806 = vmatprep.subr.mxu0 0.0
        %807 = vmatpush2.msra.mxu0 0.0
        %808 = vmatprep.subr.mxu0 0.0
        %809 = vmatpush2.msra.mxu0 0.0
        %810 = vmatprep.subr.mxu0 0.0
        %811 = vmatpush2.msra.mxu0 0.0
        %812 = vmatprep.subr.mxu0 0.0
        %813 = vmatpush2.msra.mxu0 0.0
        %814 = vmatprep.subr.mxu0 0.0
        %815 = vmatpush2.msra.mxu0 0.0
        %816 = vmatprep.mubr.f32.mxu0 0.0
        %817 = vmatmul.mubr.f32.gmra.mxu0 %v465
        %v818 = vpop.f32.mrf.mxu0
        %v819 = vadd.f32 0.0, %v818
        %v820 = vpop.f32.mrf.mxu0
        %821 = vmatprep.mubr.f32.mxu0 0.0
        %822 = vmatmul.mubr.f32.gmra.mxu0 %v470
        %v823 = vpop.f32.mrf.mxu0
        %v824 = vadd.f32 0.0, %v823
        %v825 = vpop.f32.mrf.mxu0
        %826 = vmatprep.mubr.f32.mxu0 0.0
        %827 = vmatmul.mubr.f32.gmra.mxu0 %v475
        %v828 = vpop.f32.mrf.mxu0
        %v829 = vadd.f32 0.0, %v828
        %v830 = vpop.f32.mrf.mxu0
        %831 = vmatprep.mubr.f32.mxu0 0.0
        %832 = vmatmul.mubr.f32.gmra.mxu0 %v480
        %v833 = vpop.f32.mrf.mxu0
        %v834 = vadd.f32 0.0, %v833
        %v835 = vpop.f32.mrf.mxu0
        %836 = vmatprep.mubr.f32.mxu0 0.0
        %837 = vmatmul.mubr.f32.gmra.mxu0 %v485
        %v838 = vpop.f32.mrf.mxu0
        %v839 = vadd.f32 0.0, %v838
        %v840 = vpop.f32.mrf.mxu0
        %841 = vmatprep.mubr.f32.mxu0 0.0
        %842 = vmatmul.mubr.f32.gmra.mxu0 %v490
        %v843 = vpop.f32.mrf.mxu0
        %v844 = vadd.f32 0.0, %v843
        %v845 = vpop.f32.mrf.mxu0
        %846 = vmatprep.mubr.f32.mxu0 0.0
        %847 = vmatmul.mubr.f32.gmra.mxu0 %v495
        %v848 = vpop.f32.mrf.mxu0
        %v849 = vadd.f32 0.0, %v848
        %v850 = vpop.f32.mrf.mxu0
        %851 = vmatprep.mubr.f32.mxu0 0.0
        %852 = vmatmul.mubr.f32.gmra.mxu0 %v500
        %v853 = vpop.f32.mrf.mxu0
        %v854 = vadd.f32 0.0, %v853
        %v855 = vpop.f32.mrf.mxu0
        %856 = vmatprep.mubr.f32.mxu0 0.0
        %857 = vmatmul.mubr.f32.gmra.mxu0 %v505
        %v858 = vpop.f32.mrf.mxu0
        %v859 = vadd.f32 0.0, %v858
        %v860 = vpop.f32.mrf.mxu0
        %861 = vmatprep.mubr.f32.mxu0 0.0
        %862 = vmatmul.mubr.f32.gmra.mxu0 %v510
        %v863 = vpop.f32.mrf.mxu0
        %v864 = vadd.f32 0.0, %v863
        %v865 = vpop.f32.mrf.mxu0
        %866 = vmatprep.mubr.f32.mxu0 0.0
        %867 = vmatmul.mubr.f32.gmra.mxu0 %v515
        %v868 = vpop.f32.mrf.mxu0
        %v869 = vadd.f32 0.0, %v868
        %v870 = vpop.f32.mrf.mxu0
        %871 = vmatprep.mubr.f32.mxu0 0.0
        %872 = vmatmul.mubr.f32.gmra.mxu0 %v520
        %v873 = vpop.f32.mrf.mxu0
        %v874 = vadd.f32 0.0, %v873
        %v875 = vpop.f32.mrf.mxu0
        %876 = vmatprep.mubr.f32.mxu0 0.0
        %877 = vmatmul.mubr.f32.gmra.mxu0 %v525
        %v878 = vpop.f32.mrf.mxu0
        %v879 = vadd.f32 0.0, %v878
        %v880 = vpop.f32.mrf.mxu0
        %881 = vmatprep.mubr.f32.mxu0 0.0
        %882 = vmatmul.mubr.f32.gmra.mxu0 %v530
        %v883 = vpop.f32.mrf.mxu0
        %v884 = vadd.f32 0.0, %v883
        %v885 = vpop.f32.mrf.mxu0
        %886 = vmatprep.mubr.f32.mxu0 0.0
        %887 = vmatmul.mubr.f32.gmra.mxu0 %v535
        %v888 = vpop.f32.mrf.mxu0
        %v889 = vadd.f32 0.0, %v888
        %v890 = vpop.f32.mrf.mxu0
        %891 = vmatprep.mubr.f32.mxu0 0.0
        %892 = vmatmul.mubr.f32.gmra.mxu0 %v540
        %v893 = vpop.f32.mrf.mxu0
        %v894 = vadd.f32 0.0, %v893
        %v895 = vpop.f32.mrf.mxu0
        %896 = vdwg.mxu0
        %v897 = vld [vmem:[#allocation11] sm:$0xff]
        %v898 = vld [vmem:[#allocation11 + $0x8] sm:$0xff]
        %v899 = vld [vmem:[#allocation11 + $0x10] sm:$0xff]
        %v900 = vld [vmem:[#allocation11 + $0x18] sm:$0xff]
        %v901 = vld [vmem:[#allocation11 + $0x20] sm:$0xff]
        %v902 = vld [vmem:[#allocation11 + $0x28] sm:$0xff]
        %v903 = vld [vmem:[#allocation11 + $0x30] sm:$0xff]
        %v904 = vld [vmem:[#allocation11 + $0x38] sm:$0xff]
        %v905 = vld [vmem:[#allocation11 + $0x40] sm:$0xff]
        %v906 = vld [vmem:[#allocation11 + $0x48] sm:$0xff]
        %v907 = vld [vmem:[#allocation11 + $0x50] sm:$0xff]
        %v908 = vld [vmem:[#allocation11 + $0x58] sm:$0xff]
        %v909 = vld [vmem:[#allocation11 + $0x60] sm:$0xff]
        %v910 = vld [vmem:[#allocation11 + $0x68] sm:$0xff]
        %v911 = vld [vmem:[#allocation11 + $0x70] sm:$0xff]
        %v912 = vld [vmem:[#allocation11 + $0x78] sm:$0xff]
        %v913 = vld [vmem:[#allocation11 + $0x80] sm:$0xff]
        %v914 = vld [vmem:[#allocation11 + $0x88] sm:$0xff]
        %v915 = vld [vmem:[#allocation11 + $0x90] sm:$0xff]
        %v916 = vld [vmem:[#allocation11 + $0x98] sm:$0xff]
        %v917 = vld [vmem:[#allocation11 + $0xa0] sm:$0xff]
        %v918 = vld [vmem:[#allocation11 + $0xa8] sm:$0xff]
        %v919 = vld [vmem:[#allocation11 + $0xb0] sm:$0xff]
        %v920 = vld [vmem:[#allocation11 + $0xb8] sm:$0xff]
        %v921 = vld [vmem:[#allocation11 + $0xc0] sm:$0xff]
        %v922 = vld [vmem:[#allocation11 + $0xc8] sm:$0xff]
        %v923 = vld [vmem:[#allocation11 + $0xd0] sm:$0xff]
        %v924 = vld [vmem:[#allocation11 + $0xd8] sm:$0xff]
        %v925 = vld [vmem:[#allocation11 + $0xe0] sm:$0xff]
        %v926 = vld [vmem:[#allocation11 + $0xe8] sm:$0xff]
        %v927 = vld [vmem:[#allocation11 + $0xf0] sm:$0xff]
        %v928 = vld [vmem:[#allocation11 + $0xf8] sm:$0xff]
        %v929 = vld [vmem:[#allocation11 + $0x100] sm:$0xff]
        %v930 = vld [vmem:[#allocation11 + $0x108] sm:$0xff]
        %v931 = vld [vmem:[#allocation11 + $0x110] sm:$0xff]
        %v932 = vld [vmem:[#allocation11 + $0x118] sm:$0xff]
        %v933 = vld [vmem:[#allocation11 + $0x120] sm:$0xff]
        %v934 = vld [vmem:[#allocation11 + $0x128] sm:$0xff]
        %v935 = vld [vmem:[#allocation11 + $0x130] sm:$0xff]
        %v936 = vld [vmem:[#allocation11 + $0x138] sm:$0xff]
        %v937 = vld [vmem:[#allocation11 + $0x140] sm:$0xff]
        %v938 = vld [vmem:[#allocation11 + $0x148] sm:$0xff]
        %v939 = vld [vmem:[#allocation11 + $0x150] sm:$0xff]
        %v940 = vld [vmem:[#allocation11 + $0x158] sm:$0xff]
        %v941 = vld [vmem:[#allocation11 + $0x160] sm:$0xff]
        %v942 = vld [vmem:[#allocation11 + $0x168] sm:$0xff]
        %v943 = vld [vmem:[#allocation11 + $0x170] sm:$0xff]
        %v944 = vld [vmem:[#allocation11 + $0x178] sm:$0xff]
        %945 = vmatprep.subr.mxu0 %v943
        %946 = vmatpush1.msra.mxu0 %v942
        %947 = vmatprep.subr.mxu0 %v940
        %948 = vmatpush1.msra.mxu0 %v939
        %949 = vmatprep.subr.mxu0 %v937
        %950 = vmatpush1.msra.mxu0 %v936
        %951 = vmatprep.subr.mxu0 %v934
        %952 = vmatpush1.msra.mxu0 %v933
        %953 = vmatprep.subr.mxu0 %v931
        %954 = vmatpush1.msra.mxu0 %v930
        %955 = vmatprep.subr.mxu0 %v928
        %956 = vmatpush1.msra.mxu0 %v927
        %957 = vmatprep.subr.mxu0 %v925
        %958 = vmatpush1.msra.mxu0 %v924
        %959 = vmatprep.subr.mxu0 %v922
        %960 = vmatpush1.msra.mxu0 %v921
        %961 = vmatprep.subr.mxu0 %v919
        %962 = vmatpush1.msra.mxu0 %v918
        %963 = vmatprep.subr.mxu0 %v916
        %964 = vmatpush1.msra.mxu0 %v915
        %965 = vmatprep.subr.mxu0 %v913
        %966 = vmatpush1.msra.mxu0 %v912
        %967 = vmatprep.subr.mxu0 %v910
        %968 = vmatpush1.msra.mxu0 %v909
        %969 = vmatprep.subr.mxu0 %v907
        %970 = vmatpush1.msra.mxu0 %v906
        %971 = vmatprep.subr.mxu0 %v904
        %972 = vmatpush1.msra.mxu0 %v903
        %973 = vmatprep.subr.mxu0 %v901
        %974 = vmatpush1.msra.mxu0 %v900
        %975 = vmatprep.subr.mxu0 %v898
        %976 = vmatpush1.msra.mxu0 %v897
        %977 = vmatprep.subr.mxu0 0.0
        %978 = vmatpush2.msra.mxu0 0.0
        %979 = vmatprep.subr.mxu0 0.0
        %980 = vmatpush2.msra.mxu0 0.0
        %981 = vmatprep.subr.mxu0 0.0
        %982 = vmatpush2.msra.mxu0 0.0
        %983 = vmatprep.subr.mxu0 0.0
        %984 = vmatpush2.msra.mxu0 0.0
        %985 = vmatprep.subr.mxu0 0.0
        %986 = vmatpush2.msra.mxu0 0.0
        %987 = vmatprep.subr.mxu0 0.0
        %988 = vmatpush2.msra.mxu0 0.0
        %989 = vmatprep.subr.mxu0 0.0
        %990 = vmatpush2.msra.mxu0 0.0
        %991 = vmatprep.subr.mxu0 0.0
        %992 = vmatpush2.msra.mxu0 0.0
        %993 = vmatprep.subr.mxu0 0.0
        %994 = vmatpush2.msra.mxu0 0.0
        %995 = vmatprep.subr.mxu0 0.0
        %996 = vmatpush2.msra.mxu0 0.0
        %997 = vmatprep.subr.mxu0 0.0
        %998 = vmatpush2.msra.mxu0 0.0
        %999 = vmatprep.subr.mxu0 0.0
        %1000 = vmatpush2.msra.mxu0 0.0
        %1001 = vmatprep.subr.mxu0 0.0
        %1002 = vmatpush2.msra.mxu0 0.0
        %1003 = vmatprep.subr.mxu0 0.0
        %1004 = vmatpush2.msra.mxu0 0.0
        %1005 = vmatprep.subr.mxu0 0.0
        %1006 = vmatpush2.msra.mxu0 0.0
        %1007 = vmatprep.subr.mxu0 0.0
        %1008 = vmatpush2.msra.mxu0 0.0
        %1009 = vmatprep.mubr.f32.mxu0 0.0
        %1010 = vmatmul.mubr.f32.gmra.mxu0 %v350
        %v1011 = vpop.f32.mrf.mxu0
        %v1012 = vadd.f32 0.0, %v1011
        %v1013 = vpop.f32.mrf.mxu0
        %v1014 = vadd.f32 0.0, %v1013
        %1015 = vmatprep.mubr.f32.mxu0 0.0
        %1016 = vmatmul.mubr.f32.gmra.mxu0 %v351
        %v1017 = vpop.f32.mrf.mxu0
        %v1018 = vadd.f32 0.0, %v1017
        %v1019 = vpop.f32.mrf.mxu0
        %v1020 = vadd.f32 0.0, %v1019
        %1021 = vmatprep.mubr.f32.mxu0 0.0
        %1022 = vmatmul.mubr.f32.gmra.mxu0 %v352
        %v1023 = vpop.f32.mrf.mxu0
        %v1024 = vadd.f32 0.0, %v1023
        %v1025 = vpop.f32.mrf.mxu0
        %v1026 = vadd.f32 0.0, %v1025
        %1027 = vmatprep.mubr.f32.mxu0 0.0
        %1028 = vmatmul.mubr.f32.gmra.mxu0 %v353
        %v1029 = vpop.f32.mrf.mxu0
        %v1030 = vadd.f32 0.0, %v1029
        %v1031 = vpop.f32.mrf.mxu0
        %v1032 = vadd.f32 0.0, %v1031
        %1033 = vmatprep.mubr.f32.mxu0 0.0
        %1034 = vmatmul.mubr.f32.gmra.mxu0 %v354
        %v1035 = vpop.f32.mrf.mxu0
        %v1036 = vadd.f32 0.0, %v1035
        %v1037 = vpop.f32.mrf.mxu0
        %v1038 = vadd.f32 0.0, %v1037
        %1039 = vmatprep.mubr.f32.mxu0 0.0
        %1040 = vmatmul.mubr.f32.gmra.mxu0 %v355
        %v1041 = vpop.f32.mrf.mxu0
        %v1042 = vadd.f32 0.0, %v1041
        %v1043 = vpop.f32.mrf.mxu0
        %v1044 = vadd.f32 0.0, %v1043
        %1045 = vmatprep.mubr.f32.mxu0 0.0
        %1046 = vmatmul.mubr.f32.gmra.mxu0 %v356
        %v1047 = vpop.f32.mrf.mxu0
        %v1048 = vadd.f32 0.0, %v1047
        %v1049 = vpop.f32.mrf.mxu0
        %v1050 = vadd.f32 0.0, %v1049
        %1051 = vmatprep.mubr.f32.mxu0 0.0
        %1052 = vmatmul.mubr.f32.gmra.mxu0 %v357
        %v1053 = vpop.f32.mrf.mxu0
        %v1054 = vadd.f32 0.0, %v1053
        %v1055 = vpop.f32.mrf.mxu0
        %v1056 = vadd.f32 0.0, %v1055
        %1057 = vmatprep.mubr.f32.mxu0 0.0
        %1058 = vmatmul.mubr.f32.gmra.mxu0 %v358
        %v1059 = vpop.f32.mrf.mxu0
        %v1060 = vadd.f32 0.0, %v1059
        %v1061 = vpop.f32.mrf.mxu0
        %v1062 = vadd.f32 0.0, %v1061
        %1063 = vmatprep.mubr.f32.mxu0 0.0
        %1064 = vmatmul.mubr.f32.gmra.mxu0 %v359
        %v1065 = vpop.f32.mrf.mxu0
        %v1066 = vadd.f32 0.0, %v1065
        %v1067 = vpop.f32.mrf.mxu0
        %v1068 = vadd.f32 0.0, %v1067
        %1069 = vmatprep.mubr.f32.mxu0 0.0
        %1070 = vmatmul.mubr.f32.gmra.mxu0 %v360
        %v1071 = vpop.f32.mrf.mxu0
        %v1072 = vadd.f32 0.0, %v1071
        %v1073 = vpop.f32.mrf.mxu0
        %v1074 = vadd.f32 0.0, %v1073
        %1075 = vmatprep.mubr.f32.mxu0 0.0
        %1076 = vmatmul.mubr.f32.gmra.mxu0 %v361
        %v1077 = vpop.f32.mrf.mxu0
        %v1078 = vadd.f32 0.0, %v1077
        %v1079 = vpop.f32.mrf.mxu0
        %v1080 = vadd.f32 0.0, %v1079
        %1081 = vmatprep.mubr.f32.mxu0 0.0
        %1082 = vmatmul.mubr.f32.gmra.mxu0 %v362
        %v1083 = vpop.f32.mrf.mxu0
        %v1084 = vadd.f32 0.0, %v1083
        %v1085 = vpop.f32.mrf.mxu0
        %v1086 = vadd.f32 0.0, %v1085
        %1087 = vmatprep.mubr.f32.mxu0 0.0
        %1088 = vmatmul.mubr.f32.gmra.mxu0 %v363
        %v1089 = vpop.f32.mrf.mxu0
        %v1090 = vadd.f32 0.0, %v1089
        %v1091 = vpop.f32.mrf.mxu0
        %v1092 = vadd.f32 0.0, %v1091
        %1093 = vmatprep.mubr.f32.mxu0 0.0
        %1094 = vmatmul.mubr.f32.gmra.mxu0 %v364
        %v1095 = vpop.f32.mrf.mxu0
        %v1096 = vadd.f32 0.0, %v1095
        %v1097 = vpop.f32.mrf.mxu0
        %v1098 = vadd.f32 0.0, %v1097
        %1099 = vmatprep.mubr.f32.mxu0 0.0
        %1100 = vmatmul.mubr.f32.gmra.mxu0 %v365
        %v1101 = vpop.f32.mrf.mxu0
        %v1102 = vadd.f32 0.0, %v1101
        %v1103 = vpop.f32.mrf.mxu0
        %v1104 = vadd.f32 0.0, %v1103
        %1105 = vdwg.mxu0
        %1106 = vmatprep.subr.mxu0 0.0
        %1107 = vmatpush1.msra.mxu0 %v944
        %1108 = vmatprep.subr.mxu0 0.0
        %1109 = vmatpush1.msra.mxu0 %v941
        %1110 = vmatprep.subr.mxu0 0.0
        %1111 = vmatpush1.msra.mxu0 %v938
        %1112 = vmatprep.subr.mxu0 0.0
        %1113 = vmatpush1.msra.mxu0 %v935
        %1114 = vmatprep.subr.mxu0 0.0
        %1115 = vmatpush1.msra.mxu0 %v932
        %1116 = vmatprep.subr.mxu0 0.0
        %1117 = vmatpush1.msra.mxu0 %v929
        %1118 = vmatprep.subr.mxu0 0.0
        %1119 = vmatpush1.msra.mxu0 %v926
        %1120 = vmatprep.subr.mxu0 0.0
        %1121 = vmatpush1.msra.mxu0 %v923
        %1122 = vmatprep.subr.mxu0 0.0
        %1123 = vmatpush1.msra.mxu0 %v920
        %1124 = vmatprep.subr.mxu0 0.0
        %1125 = vmatpush1.msra.mxu0 %v917
        %1126 = vmatprep.subr.mxu0 0.0
        %1127 = vmatpush1.msra.mxu0 %v914
        %1128 = vmatprep.subr.mxu0 0.0
        %1129 = vmatpush1.msra.mxu0 %v911
        %1130 = vmatprep.subr.mxu0 0.0
        %1131 = vmatpush1.msra.mxu0 %v908
        %1132 = vmatprep.subr.mxu0 0.0
        %1133 = vmatpush1.msra.mxu0 %v905
        %1134 = vmatprep.subr.mxu0 0.0
        %1135 = vmatpush1.msra.mxu0 %v902
        %1136 = vmatprep.subr.mxu0 0.0
        %1137 = vmatpush1.msra.mxu0 %v899
        %1138 = vmatprep.subr.mxu0 0.0
        %1139 = vmatpush2.msra.mxu0 0.0
        %1140 = vmatprep.subr.mxu0 0.0
        %1141 = vmatpush2.msra.mxu0 0.0
        %1142 = vmatprep.subr.mxu0 0.0
        %1143 = vmatpush2.msra.mxu0 0.0
        %1144 = vmatprep.subr.mxu0 0.0
        %1145 = vmatpush2.msra.mxu0 0.0
        %1146 = vmatprep.subr.mxu0 0.0
        %1147 = vmatpush2.msra.mxu0 0.0
        %1148 = vmatprep.subr.mxu0 0.0
        %1149 = vmatpush2.msra.mxu0 0.0
        %1150 = vmatprep.subr.mxu0 0.0
        %1151 = vmatpush2.msra.mxu0 0.0
        %1152 = vmatprep.subr.mxu0 0.0
        %1153 = vmatpush2.msra.mxu0 0.0
        %1154 = vmatprep.subr.mxu0 0.0
        %1155 = vmatpush2.msra.mxu0 0.0
        %1156 = vmatprep.subr.mxu0 0.0
        %1157 = vmatpush2.msra.mxu0 0.0
        %1158 = vmatprep.subr.mxu0 0.0
        %1159 = vmatpush2.msra.mxu0 0.0
        %1160 = vmatprep.subr.mxu0 0.0
        %1161 = vmatpush2.msra.mxu0 0.0
        %1162 = vmatprep.subr.mxu0 0.0
        %1163 = vmatpush2.msra.mxu0 0.0
        %1164 = vmatprep.subr.mxu0 0.0
        %1165 = vmatpush2.msra.mxu0 0.0
        %1166 = vmatprep.subr.mxu0 0.0
        %1167 = vmatpush2.msra.mxu0 0.0
        %1168 = vmatprep.subr.mxu0 0.0
        %1169 = vmatpush2.msra.mxu0 0.0
        %1170 = vmatprep.mubr.f32.mxu0 0.0
        %1171 = vmatmul.mubr.f32.gmra.mxu0 %v350
        %v1172 = vpop.f32.mrf.mxu0
        %v1173 = vadd.f32 0.0, %v1172
        %v1174 = vpop.f32.mrf.mxu0
        %1175 = vmatprep.mubr.f32.mxu0 0.0
        %1176 = vmatmul.mubr.f32.gmra.mxu0 %v351
        %v1177 = vpop.f32.mrf.mxu0
        %v1178 = vadd.f32 0.0, %v1177
        %v1179 = vpop.f32.mrf.mxu0
        %1180 = vmatprep.mubr.f32.mxu0 0.0
        %1181 = vmatmul.mubr.f32.gmra.mxu0 %v352
        %v1182 = vpop.f32.mrf.mxu0
        %v1183 = vadd.f32 0.0, %v1182
        %v1184 = vpop.f32.mrf.mxu0
        %1185 = vmatprep.mubr.f32.mxu0 0.0
        %1186 = vmatmul.mubr.f32.gmra.mxu0 %v353
        %v1187 = vpop.f32.mrf.mxu0
        %v1188 = vadd.f32 0.0, %v1187
        %v1189 = vpop.f32.mrf.mxu0
        %1190 = vmatprep.mubr.f32.mxu0 0.0
        %1191 = vmatmul.mubr.f32.gmra.mxu0 %v354
        %v1192 = vpop.f32.mrf.mxu0
        %v1193 = vadd.f32 0.0, %v1192
        %v1194 = vpop.f32.mrf.mxu0
        %1195 = vmatprep.mubr.f32.mxu0 0.0
        %1196 = vmatmul.mubr.f32.gmra.mxu0 %v355
        %v1197 = vpop.f32.mrf.mxu0
        %v1198 = vadd.f32 0.0, %v1197
        %v1199 = vpop.f32.mrf.mxu0
        %1200 = vmatprep.mubr.f32.mxu0 0.0
        %1201 = vmatmul.mubr.f32.gmra.mxu0 %v356
        %v1202 = vpop.f32.mrf.mxu0
        %v1203 = vadd.f32 0.0, %v1202
        %v1204 = vpop.f32.mrf.mxu0
        %1205 = vmatprep.mubr.f32.mxu0 0.0
        %1206 = vmatmul.mubr.f32.gmra.mxu0 %v357
        %v1207 = vpop.f32.mrf.mxu0
        %v1208 = vadd.f32 0.0, %v1207
        %v1209 = vpop.f32.mrf.mxu0
        %1210 = vmatprep.mubr.f32.mxu0 0.0
        %1211 = vmatmul.mubr.f32.gmra.mxu0 %v358
        %v1212 = vpop.f32.mrf.mxu0
        %v1213 = vadd.f32 0.0, %v1212
        %v1214 = vpop.f32.mrf.mxu0
        %1215 = vmatprep.mubr.f32.mxu0 0.0
        %1216 = vmatmul.mubr.f32.gmra.mxu0 %v359
        %v1217 = vpop.f32.mrf.mxu0
        %v1218 = vadd.f32 0.0, %v1217
        %v1219 = vpop.f32.mrf.mxu0
        %1220 = vmatprep.mubr.f32.mxu0 0.0
        %1221 = vmatmul.mubr.f32.gmra.mxu0 %v360
        %v1222 = vpop.f32.mrf.mxu0
        %v1223 = vadd.f32 0.0, %v1222
        %v1224 = vpop.f32.mrf.mxu0
        %1225 = vmatprep.mubr.f32.mxu0 0.0
        %1226 = vmatmul.mubr.f32.gmra.mxu0 %v361
        %v1227 = vpop.f32.mrf.mxu0
        %v1228 = vadd.f32 0.0, %v1227
        %v1229 = vpop.f32.mrf.mxu0
        %1230 = vmatprep.mubr.f32.mxu0 0.0
        %1231 = vmatmul.mubr.f32.gmra.mxu0 %v362
        %v1232 = vpop.f32.mrf.mxu0
        %v1233 = vadd.f32 0.0, %v1232
        %v1234 = vpop.f32.mrf.mxu0
        %1235 = vmatprep.mubr.f32.mxu0 0.0
        %1236 = vmatmul.mubr.f32.gmra.mxu0 %v363
        %v1237 = vpop.f32.mrf.mxu0
        %v1238 = vadd.f32 0.0, %v1237
        %v1239 = vpop.f32.mrf.mxu0
        %1240 = vmatprep.mubr.f32.mxu0 0.0
        %1241 = vmatmul.mubr.f32.gmra.mxu0 %v364
        %v1242 = vpop.f32.mrf.mxu0
        %v1243 = vadd.f32 0.0, %v1242
        %v1244 = vpop.f32.mrf.mxu0
        %1245 = vmatprep.mubr.f32.mxu0 0.0
        %1246 = vmatmul.mubr.f32.gmra.mxu0 %v365
        %v1247 = vpop.f32.mrf.mxu0
        %v1248 = vadd.f32 0.0, %v1247
        %v1249 = vpop.f32.mrf.mxu0
        %1250 = vdwg.mxu0
        %v1251 = vld [vmem:[%s5] sm:$0x1]
        %v1252 = vld [vmem:[%s5 + $0x1] sm:$0x1]
        %v1253 = vld [vmem:[%s5 + $0x2] sm:$0x1]
        %v1254 = vld [vmem:[%s5 + $0x3] sm:$0x1]
        %v1255 = vadd.f32 %v658, %v1012
        %v1256 = vadd.f32 %v664, %v1018
        %v1257 = vadd.f32 %v670, %v1024
        %v1258 = vadd.f32 %v676, %v1030
        %v1259 = vadd.f32 %v682, %v1036
        %v1260 = vadd.f32 %v688, %v1042
        %v1261 = vadd.f32 %v694, %v1048
        %v1262 = vadd.f32 %v700, %v1054
        %v1263 = vadd.f32 %v706, %v1060
        %v1264 = vadd.f32 %v712, %v1066
        %v1265 = vadd.f32 %v718, %v1072
        %v1266 = vadd.f32 %v724, %v1078
        %v1267 = vadd.f32 %v730, %v1084
        %v1268 = vadd.f32 %v736, %v1090
        %v1269 = vadd.f32 %v742, %v1096
        %v1270 = vadd.f32 %v748, %v1102
        %v1271 = vlaneseq
        %v1272 = vshrl.u32 %v1271, 7
        %v1273 = vsub.s32 0, %v1272
        %v1274 = vrot.slane %v1251, %v1273
        %v1275 = vadd.f32 %v1255, %v1274
        %v1276 = vadd.f32 %v1256, %v1274
        %v1277 = vadd.f32 %v1257, %v1274
        %v1278 = vadd.f32 %v1258, %v1274
        %v1279 = vadd.f32 %v1259, %v1274
        %v1280 = vadd.f32 %v1260, %v1274
        %v1281 = vadd.f32 %v1261, %v1274
        %v1282 = vadd.f32 %v1262, %v1274
        %v1283 = vadd.f32 %v1263, %v1274
        %v1284 = vadd.f32 %v1264, %v1274
        %v1285 = vadd.f32 %v1265, %v1274
        %v1286 = vadd.f32 %v1266, %v1274
        %v1287 = vadd.f32 %v1267, %v1274
        %v1288 = vadd.f32 %v1268, %v1274
        %v1289 = vadd.f32 %v1269, %v1274
        %v1290 = vadd.f32 %v1270, %v1274
        %v1291 = vxor.u32 %v1275, 2147483648
        %v1292 = vxor.u32 %v1276, 2147483648
        %v1293 = vxor.u32 %v1277, 2147483648
        %v1294 = vxor.u32 %v1278, 2147483648
        %v1295 = vxor.u32 %v1279, 2147483648
        %v1296 = vxor.u32 %v1280, 2147483648
        %v1297 = vxor.u32 %v1281, 2147483648
        %v1298 = vxor.u32 %v1282, 2147483648
        %v1299 = vxor.u32 %v1283, 2147483648
        %v1300 = vxor.u32 %v1284, 2147483648
        %v1301 = vxor.u32 %v1285, 2147483648
        %v1302 = vxor.u32 %v1286, 2147483648
        %v1303 = vxor.u32 %v1287, 2147483648
        %v1304 = vxor.u32 %v1288, 2147483648
        %v1305 = vxor.u32 %v1289, 2147483648
        %v1306 = vxor.u32 %v1290, 2147483648
        %v1307 = vmul.f32 %v1291, 1.442695
        %v1308 = vpow.pop %v1307
        %v1309 = vmul.f32 %v1292, 1.442695
        %v1310 = vpow.pop %v1309
        %v1311 = vmul.f32 %v1293, 1.442695
        %v1312 = vpow.pop %v1311
        %v1313 = vmul.f32 %v1294, 1.442695
        %v1314 = vpow.pop %v1313
        %v1315 = vmul.f32 %v1295, 1.442695
        %v1316 = vpow.pop %v1315
        %v1317 = vmul.f32 %v1296, 1.442695
        %v1318 = vpow.pop %v1317
        %v1319 = vmul.f32 %v1297, 1.442695
        %v1320 = vpow.pop %v1319
        %v1321 = vmul.f32 %v1298, 1.442695
        %v1322 = vpow.pop %v1321
        %v1323 = vmul.f32 %v1299, 1.442695
        %v1324 = vpow.pop %v1323
        %v1325 = vmul.f32 %v1300, 1.442695
        %v1326 = vpow.pop %v1325
        %v1327 = vmul.f32 %v1301, 1.442695
        %v1328 = vpow.pop %v1327
        %v1329 = vmul.f32 %v1302, 1.442695
        %v1330 = vpow.pop %v1329
        %v1331 = vmul.f32 %v1303, 1.442695
        %v1332 = vpow.pop %v1331
        %v1333 = vmul.f32 %v1304, 1.442695
        %v1334 = vpow.pop %v1333
        %v1335 = vmul.f32 %v1305, 1.442695
        %v1336 = vpow.pop %v1335
        %v1337 = vmul.f32 %v1306, 1.442695
        %v1338 = vpow.pop %v1337
        %v1339 = vadd.f32 %v1308, 1.0
        %v1340 = vadd.f32 %v1310, 1.0
        %v1341 = vadd.f32 %v1312, 1.0
        %v1342 = vadd.f32 %v1314, 1.0
        %v1343 = vadd.f32 %v1316, 1.0
        %v1344 = vadd.f32 %v1318, 1.0
        %v1345 = vadd.f32 %v1320, 1.0
        %v1346 = vadd.f32 %v1322, 1.0
        %v1347 = vadd.f32 %v1324, 1.0
        %v1348 = vadd.f32 %v1326, 1.0
        %v1349 = vadd.f32 %v1328, 1.0
        %v1350 = vadd.f32 %v1330, 1.0
        %v1351 = vadd.f32 %v1332, 1.0
        %v1352 = vadd.f32 %v1334, 1.0
        %v1353 = vadd.f32 %v1336, 1.0
        %v1354 = vadd.f32 %v1338, 1.0
        %v1355 = vrcp.pop %v1339
        %v1356 = vmul.f32 1.0, %v1355
        %v1357 = vrcp.pop %v1340
        %v1358 = vmul.f32 1.0, %v1357
        %v1359 = vrcp.pop %v1341
        %v1360 = vmul.f32 1.0, %v1359
        %v1361 = vrcp.pop %v1342
        %v1362 = vmul.f32 1.0, %v1361
        %v1363 = vrcp.pop %v1343
        %v1364 = vmul.f32 1.0, %v1363
        %v1365 = vrcp.pop %v1344
        %v1366 = vmul.f32 1.0, %v1365
        %v1367 = vrcp.pop %v1345
        %v1368 = vmul.f32 1.0, %v1367
        %v1369 = vrcp.pop %v1346
        %v1370 = vmul.f32 1.0, %v1369
        %v1371 = vrcp.pop %v1347
        %v1372 = vmul.f32 1.0, %v1371
        %v1373 = vrcp.pop %v1348
        %v1374 = vmul.f32 1.0, %v1373
        %v1375 = vrcp.pop %v1349
        %v1376 = vmul.f32 1.0, %v1375
        %v1377 = vrcp.pop %v1350
        %v1378 = vmul.f32 1.0, %v1377
        %v1379 = vrcp.pop %v1351
        %v1380 = vmul.f32 1.0, %v1379
        %v1381 = vrcp.pop %v1352
        %v1382 = vmul.f32 1.0, %v1381
        %v1383 = vrcp.pop %v1353
        %v1384 = vmul.f32 1.0, %v1383
        %v1385 = vrcp.pop %v1354
        %v1386 = vmul.f32 1.0, %v1385
        %v1387 = vadd.f32 %v660, %v1014
        %v1388 = vadd.f32 %v666, %v1020
        %v1389 = vadd.f32 %v672, %v1026
        %v1390 = vadd.f32 %v678, %v1032
        %v1391 = vadd.f32 %v684, %v1038
        %v1392 = vadd.f32 %v690, %v1044
        %v1393 = vadd.f32 %v696, %v1050
        %v1394 = vadd.f32 %v702, %v1056
        %v1395 = vadd.f32 %v708, %v1062
        %v1396 = vadd.f32 %v714, %v1068
        %v1397 = vadd.f32 %v720, %v1074
        %v1398 = vadd.f32 %v726, %v1080
        %v1399 = vadd.f32 %v732, %v1086
        %v1400 = vadd.f32 %v738, %v1092
        %v1401 = vadd.f32 %v744, %v1098
        %v1402 = vadd.f32 %v750, %v1104
        %v1403 = vlaneseq
        %v1404 = vshrl.u32 %v1403, 7
        %v1405 = vsub.s32 0, %v1404
        %v1406 = vrot.slane %v1252, %v1405
        %v1407 = vadd.f32 %v1387, %v1406
        %v1408 = vadd.f32 %v1388, %v1406
        %v1409 = vadd.f32 %v1389, %v1406
        %v1410 = vadd.f32 %v1390, %v1406
        %v1411 = vadd.f32 %v1391, %v1406
        %v1412 = vadd.f32 %v1392, %v1406
        %v1413 = vadd.f32 %v1393, %v1406
        %v1414 = vadd.f32 %v1394, %v1406
        %v1415 = vadd.f32 %v1395, %v1406
        %v1416 = vadd.f32 %v1396, %v1406
        %v1417 = vadd.f32 %v1397, %v1406
        %v1418 = vadd.f32 %v1398, %v1406
        %v1419 = vadd.f32 %v1399, %v1406
        %v1420 = vadd.f32 %v1400, %v1406
        %v1421 = vadd.f32 %v1401, %v1406
        %v1422 = vadd.f32 %v1402, %v1406
        %v1423 = vxor.u32 %v1407, 2147483648
        %v1424 = vxor.u32 %v1408, 2147483648
        %v1425 = vxor.u32 %v1409, 2147483648
        %v1426 = vxor.u32 %v1410, 2147483648
        %v1427 = vxor.u32 %v1411, 2147483648
        %v1428 = vxor.u32 %v1412, 2147483648
        %v1429 = vxor.u32 %v1413, 2147483648
        %v1430 = vxor.u32 %v1414, 2147483648
        %v1431 = vxor.u32 %v1415, 2147483648
        %v1432 = vxor.u32 %v1416, 2147483648
        %v1433 = vxor.u32 %v1417, 2147483648
        %v1434 = vxor.u32 %v1418, 2147483648
        %v1435 = vxor.u32 %v1419, 2147483648
        %v1436 = vxor.u32 %v1420, 2147483648
        %v1437 = vxor.u32 %v1421, 2147483648
        %v1438 = vxor.u32 %v1422, 2147483648
        %v1439 = vmul.f32 %v1423, 1.442695
        %v1440 = vpow.pop %v1439
        %v1441 = vmul.f32 %v1424, 1.442695
        %v1442 = vpow.pop %v1441
        %v1443 = vmul.f32 %v1425, 1.442695
        %v1444 = vpow.pop %v1443
        %v1445 = vmul.f32 %v1426, 1.442695
        %v1446 = vpow.pop %v1445
        %v1447 = vmul.f32 %v1427, 1.442695
        %v1448 = vpow.pop %v1447
        %v1449 = vmul.f32 %v1428, 1.442695
        %v1450 = vpow.pop %v1449
        %v1451 = vmul.f32 %v1429, 1.442695
        %v1452 = vpow.pop %v1451
        %v1453 = vmul.f32 %v1430, 1.442695
        %v1454 = vpow.pop %v1453
        %v1455 = vmul.f32 %v1431, 1.442695
        %v1456 = vpow.pop %v1455
        %v1457 = vmul.f32 %v1432, 1.442695
        %v1458 = vpow.pop %v1457
        %v1459 = vmul.f32 %v1433, 1.442695
        %v1460 = vpow.pop %v1459
        %v1461 = vmul.f32 %v1434, 1.442695
        %v1462 = vpow.pop %v1461
        %v1463 = vmul.f32 %v1435, 1.442695
        %v1464 = vpow.pop %v1463
        %v1465 = vmul.f32 %v1436, 1.442695
        %v1466 = vpow.pop %v1465
        %v1467 = vmul.f32 %v1437, 1.442695
        %v1468 = vpow.pop %v1467
        %v1469 = vmul.f32 %v1438, 1.442695
        %v1470 = vpow.pop %v1469
        %v1471 = vadd.f32 %v1440, 1.0
        %v1472 = vadd.f32 %v1442, 1.0
        %v1473 = vadd.f32 %v1444, 1.0
        %v1474 = vadd.f32 %v1446, 1.0
        %v1475 = vadd.f32 %v1448, 1.0
        %v1476 = vadd.f32 %v1450, 1.0
        %v1477 = vadd.f32 %v1452, 1.0
        %v1478 = vadd.f32 %v1454, 1.0
        %v1479 = vadd.f32 %v1456, 1.0
        %v1480 = vadd.f32 %v1458, 1.0
        %v1481 = vadd.f32 %v1460, 1.0
        %v1482 = vadd.f32 %v1462, 1.0
        %v1483 = vadd.f32 %v1464, 1.0
        %v1484 = vadd.f32 %v1466, 1.0
        %v1485 = vadd.f32 %v1468, 1.0
        %v1486 = vadd.f32 %v1470, 1.0
        %v1487 = vrcp.pop %v1471
        %v1488 = vmul.f32 1.0, %v1487
        %v1489 = vrcp.pop %v1472
        %v1490 = vmul.f32 1.0, %v1489
        %v1491 = vrcp.pop %v1473
        %v1492 = vmul.f32 1.0, %v1491
        %v1493 = vrcp.pop %v1474
        %v1494 = vmul.f32 1.0, %v1493
        %v1495 = vrcp.pop %v1475
        %v1496 = vmul.f32 1.0, %v1495
        %v1497 = vrcp.pop %v1476
        %v1498 = vmul.f32 1.0, %v1497
        %v1499 = vrcp.pop %v1477
        %v1500 = vmul.f32 1.0, %v1499
        %v1501 = vrcp.pop %v1478
        %v1502 = vmul.f32 1.0, %v1501
        %v1503 = vrcp.pop %v1479
        %v1504 = vmul.f32 1.0, %v1503
        %v1505 = vrcp.pop %v1480
        %v1506 = vmul.f32 1.0, %v1505
        %v1507 = vrcp.pop %v1481
        %v1508 = vmul.f32 1.0, %v1507
        %v1509 = vrcp.pop %v1482
        %v1510 = vmul.f32 1.0, %v1509
        %v1511 = vrcp.pop %v1483
        %v1512 = vmul.f32 1.0, %v1511
        %v1513 = vrcp.pop %v1484
        %v1514 = vmul.f32 1.0, %v1513
        %v1515 = vrcp.pop %v1485
        %v1516 = vmul.f32 1.0, %v1515
        %v1517 = vrcp.pop %v1486
        %v1518 = vmul.f32 1.0, %v1517
        %v1519 = vlaneseq
        %v1520 = vshrl.u32 %v1519, 7
        %v1521 = vsub.s32 0, %v1520
        %v1522 = vrot.slane %v1253, %v1521
        %v1523 = vadd.f32 %v819, %v1522
        %v1524 = vadd.f32 %v824, %v1522
        %v1525 = vadd.f32 %v829, %v1522
        %v1526 = vadd.f32 %v834, %v1522
        %v1527 = vadd.f32 %v839, %v1522
        %v1528 = vadd.f32 %v844, %v1522
        %v1529 = vadd.f32 %v849, %v1522
        %v1530 = vadd.f32 %v854, %v1522
        %v1531 = vadd.f32 %v859, %v1522
        %v1532 = vadd.f32 %v864, %v1522
        %v1533 = vadd.f32 %v869, %v1522
        %v1534 = vadd.f32 %v874, %v1522
        %v1535 = vadd.f32 %v879, %v1522
        %v1536 = vadd.f32 %v884, %v1522
        %v1537 = vadd.f32 %v889, %v1522
        %v1538 = vadd.f32 %v894, %v1522
        %v1539 = vlaneseq
        %v1540 = vshrl.u32 %v1539, 7
        %v1541 = vsub.s32 0, %v1540
        %v1542 = vrot.slane %v1254, %v1541
        %v1543 = vadd.f32 %v1173, %v1542
        %v1544 = vadd.f32 %v1178, %v1542
        %v1545 = vadd.f32 %v1183, %v1542
        %v1546 = vadd.f32 %v1188, %v1542
        %v1547 = vadd.f32 %v1193, %v1542
        %v1548 = vadd.f32 %v1198, %v1542
        %v1549 = vadd.f32 %v1203, %v1542
        %v1550 = vadd.f32 %v1208, %v1542
        %v1551 = vadd.f32 %v1213, %v1542
        %v1552 = vadd.f32 %v1218, %v1542
        %v1553 = vadd.f32 %v1223, %v1542
        %v1554 = vadd.f32 %v1228, %v1542
        %v1555 = vadd.f32 %v1233, %v1542
        %v1556 = vadd.f32 %v1238, %v1542
        %v1557 = vadd.f32 %v1243, %v1542
        %v1558 = vadd.f32 %v1248, %v1542
        %v1559 = vmul.f32 %v1356, %v1543
        %v1560 = vmul.f32 %v1358, %v1544
        %v1561 = vmul.f32 %v1360, %v1545
        %v1562 = vmul.f32 %v1362, %v1546
        %v1563 = vmul.f32 %v1364, %v1547
        %v1564 = vmul.f32 %v1366, %v1548
        %v1565 = vmul.f32 %v1368, %v1549
        %v1566 = vmul.f32 %v1370, %v1550
        %v1567 = vmul.f32 %v1372, %v1551
        %v1568 = vmul.f32 %v1374, %v1552
        %v1569 = vmul.f32 %v1376, %v1553
        %v1570 = vmul.f32 %v1378, %v1554
        %v1571 = vmul.f32 %v1380, %v1555
        %v1572 = vmul.f32 %v1382, %v1556
        %v1573 = vmul.f32 %v1384, %v1557
        %v1574 = vmul.f32 %v1386, %v1558
        %v1575 = vadd.f32 %v1523, %v1559
        %v1576 = vadd.f32 %v1524, %v1560
        %v1577 = vadd.f32 %v1525, %v1561
        %v1578 = vadd.f32 %v1526, %v1562
        %v1579 = vadd.f32 %v1527, %v1563
        %v1580 = vadd.f32 %v1528, %v1564
        %v1581 = vadd.f32 %v1529, %v1565
        %v1582 = vadd.f32 %v1530, %v1566
        %v1583 = vadd.f32 %v1531, %v1567
        %v1584 = vadd.f32 %v1532, %v1568
        %v1585 = vadd.f32 %v1533, %v1569
        %v1586 = vadd.f32 %v1534, %v1570
        %v1587 = vadd.f32 %v1535, %v1571
        %v1588 = vadd.f32 %v1536, %v1572
        %v1589 = vadd.f32 %v1537, %v1573
        %v1590 = vadd.f32 %v1538, %v1574
        %v1591 = vtanh.pop %v1575
        %v1592 = vtanh.pop %v1576
        %v1593 = vtanh.pop %v1577
        %v1594 = vtanh.pop %v1578
        %v1595 = vtanh.pop %v1579
        %v1596 = vtanh.pop %v1580
        %v1597 = vtanh.pop %v1581
        %v1598 = vtanh.pop %v1582
        %v1599 = vtanh.pop %v1583
        %v1600 = vtanh.pop %v1584
        %v1601 = vtanh.pop %v1585
        %v1602 = vtanh.pop %v1586
        %v1603 = vtanh.pop %v1587
        %v1604 = vtanh.pop %v1588
        %v1605 = vtanh.pop %v1589
        %v1606 = vtanh.pop %v1590
        %v1607 = vsub.f32 1.0, %v1488
        %v1608 = vsub.f32 1.0, %v1490
        %v1609 = vsub.f32 1.0, %v1492
        %v1610 = vsub.f32 1.0, %v1494
        %v1611 = vsub.f32 1.0, %v1496
        %v1612 = vsub.f32 1.0, %v1498
        %v1613 = vsub.f32 1.0, %v1500
        %v1614 = vsub.f32 1.0, %v1502
        %v1615 = vsub.f32 1.0, %v1504
        %v1616 = vsub.f32 1.0, %v1506
        %v1617 = vsub.f32 1.0, %v1508
        %v1618 = vsub.f32 1.0, %v1510
        %v1619 = vsub.f32 1.0, %v1512
        %v1620 = vsub.f32 1.0, %v1514
        %v1621 = vsub.f32 1.0, %v1516
        %v1622 = vsub.f32 1.0, %v1518
        %v1623 = vmul.f32 %v1607, %v1591
        %v1624 = vmul.f32 %v1608, %v1592
        %v1625 = vmul.f32 %v1609, %v1593
        %v1626 = vmul.f32 %v1610, %v1594
        %v1627 = vmul.f32 %v1611, %v1595
        %v1628 = vmul.f32 %v1612, %v1596
        %v1629 = vmul.f32 %v1613, %v1597
        %v1630 = vmul.f32 %v1614, %v1598
        %v1631 = vmul.f32 %v1615, %v1599
        %v1632 = vmul.f32 %v1616, %v1600
        %v1633 = vmul.f32 %v1617, %v1601
        %v1634 = vmul.f32 %v1618, %v1602
        %v1635 = vmul.f32 %v1619, %v1603
        %v1636 = vmul.f32 %v1620, %v1604
        %v1637 = vmul.f32 %v1621, %v1605
        %v1638 = vmul.f32 %v1622, %v1606
        %v1639 = vmul.f32 %v1488, %v350
        %v1640 = vmul.f32 %v1490, %v351
        %v1641 = vmul.f32 %v1492, %v352
        %v1642 = vmul.f32 %v1494, %v353
        %v1643 = vmul.f32 %v1496, %v354
        %v1644 = vmul.f32 %v1498, %v355
        %v1645 = vmul.f32 %v1500, %v356
        %v1646 = vmul.f32 %v1502, %v357
        %v1647 = vmul.f32 %v1504, %v358
        %v1648 = vmul.f32 %v1506, %v359
        %v1649 = vmul.f32 %v1508, %v360
        %v1650 = vmul.f32 %v1510, %v361
        %v1651 = vmul.f32 %v1512, %v362
        %v1652 = vmul.f32 %v1514, %v363
        %v1653 = vmul.f32 %v1516, %v364
        %v1654 = vmul.f32 %v1518, %v365
        %v1655 = vadd.f32 %v1623, %v1639
        %v1656 = vadd.f32 %v1624, %v1640
        %v1657 = vadd.f32 %v1625, %v1641
        %v1658 = vadd.f32 %v1626, %v1642
        %v1659 = vadd.f32 %v1627, %v1643
        %v1660 = vadd.f32 %v1628, %v1644
        %v1661 = vadd.f32 %v1629, %v1645
        %v1662 = vadd.f32 %v1630, %v1646
        %v1663 = vadd.f32 %v1631, %v1647
        %v1664 = vadd.f32 %v1632, %v1648
        %v1665 = vadd.f32 %v1633, %v1649
        %v1666 = vadd.f32 %v1634, %v1650
        %v1667 = vadd.f32 %v1635, %v1651
        %v1668 = vadd.f32 %v1636, %v1652
        %v1669 = vadd.f32 %v1637, %v1653
        %v1670 = vadd.f32 %v1638, %v1654
        %1671 = vst [vmem:[#allocation2] sm:$0xff] %v1655
        %1672 = vst [vmem:[#allocation2 + $0x8] sm:$0xff] %v1656
        %1673 = vst [vmem:[#allocation2 + $0x10] sm:$0xff] %v1657
        %1674 = vst [vmem:[#allocation2 + $0x18] sm:$0xff] %v1658
        %1675 = vst [vmem:[#allocation2 + $0x20] sm:$0xff] %v1659
        %1676 = vst [vmem:[#allocation2 + $0x28] sm:$0xff] %v1660
        %1677 = vst [vmem:[#allocation2 + $0x30] sm:$0xff] %v1661
        %1678 = vst [vmem:[#allocation2 + $0x38] sm:$0xff] %v1662
        %1679 = vst [vmem:[#allocation2 + $0x40] sm:$0xff] %v1663
        %1680 = vst [vmem:[#allocation2 + $0x48] sm:$0xff] %v1664
        %1681 = vst [vmem:[#allocation2 + $0x50] sm:$0xff] %v1665
        %1682 = vst [vmem:[#allocation2 + $0x58] sm:$0xff] %v1666
        %1683 = vst [vmem:[#allocation2 + $0x60] sm:$0xff] %v1667
        %1684 = vst [vmem:[#allocation2 + $0x68] sm:$0xff] %v1668
        %1685 = vst [vmem:[#allocation2 + $0x70] sm:$0xff] %v1669
        %1686 = vst [vmem:[#allocation2 + $0x78] sm:$0xff] %v1670
        %p1687 = scmp.eq.s32.totalorder %s23, 2
        // Predicated region
        $region69: #{tpu_custom_call.1} parent=43 // pred_check
          %p1688 = pneg %p1687
        $region70: #{tpu_custom_call.1} parent=43 // pred_check_branch
          %1690 = sbr.rel (%p1688) target = $region72
        $region71: #{tpu_custom_call.1} parent=43 // pred_region
          %v1691 = vld [vmem:[#allocation8] sm:$0xff]
          %v1692 = vld [vmem:[#allocation2] sm:$0xff]
          %v1693 = vld [vmem:[#allocation2 + $0x8] sm:$0xff]
          %v1694 = vld [vmem:[#allocation2 + $0x10] sm:$0xff]
          %v1695 = vld [vmem:[#allocation2 + $0x18] sm:$0xff]
          %v1696 = vld [vmem:[#allocation2 + $0x20] sm:$0xff]
          %v1697 = vld [vmem:[#allocation2 + $0x28] sm:$0xff]
          %v1698 = vld [vmem:[#allocation2 + $0x30] sm:$0xff]
          %v1699 = vld [vmem:[#allocation2 + $0x38] sm:$0xff]
          %v1700 = vld [vmem:[#allocation2 + $0x40] sm:$0xff]
          %v1701 = vld [vmem:[#allocation2 + $0x48] sm:$0xff]
          %v1702 = vld [vmem:[#allocation2 + $0x50] sm:$0xff]
          %v1703 = vld [vmem:[#allocation2 + $0x58] sm:$0xff]
          %v1704 = vld [vmem:[#allocation2 + $0x60] sm:$0xff]
          %v1705 = vld [vmem:[#allocation2 + $0x68] sm:$0xff]
          %v1706 = vld [vmem:[#allocation2 + $0x70] sm:$0xff]
          %v1707 = vld [vmem:[#allocation2 + $0x78] sm:$0xff]
          %1708 = vmatprep.subr.mxu0 0.0
          %1709 = vmatpush1.msra.mxu0 %v1707
          %1710 = vmatprep.subr.mxu0 0.0
          %1711 = vmatpush1.msra.mxu0 %v1706
          %1712 = vmatprep.subr.mxu0 0.0
          %1713 = vmatpush1.msra.mxu0 %v1705
          %1714 = vmatprep.subr.mxu0 0.0
          %1715 = vmatpush1.msra.mxu0 %v1704
          %1716 = vmatprep.subr.mxu0 0.0
          %1717 = vmatpush1.msra.mxu0 %v1703
          %1718 = vmatprep.subr.mxu0 0.0
          %1719 = vmatpush1.msra.mxu0 %v1702
          %1720 = vmatprep.subr.mxu0 0.0
          %1721 = vmatpush1.msra.mxu0 %v1701
          %1722 = vmatprep.subr.mxu0 0.0
          %1723 = vmatpush1.msra.mxu0 %v1700
          %1724 = vmatprep.subr.mxu0 0.0
          %1725 = vmatpush1.msra.mxu0 %v1699
          %1726 = vmatprep.subr.mxu0 0.0
          %1727 = vmatpush1.msra.mxu0 %v1698
          %1728 = vmatprep.subr.mxu0 0.0
          %1729 = vmatpush1.msra.mxu0 %v1697
          %1730 = vmatprep.subr.mxu0 0.0
          %1731 = vmatpush1.msra.mxu0 %v1696
          %1732 = vmatprep.subr.mxu0 0.0
          %1733 = vmatpush1.msra.mxu0 %v1695
          %1734 = vmatprep.subr.mxu0 0.0
          %1735 = vmatpush1.msra.mxu0 %v1694
          %1736 = vmatprep.subr.mxu0 0.0
          %1737 = vmatpush1.msra.mxu0 %v1693
          %1738 = vmatprep.subr.mxu0 0.0
          %1739 = vmatpush1.msra.mxu0 %v1692
          %1740 = vmatprep.subr.mxu0 0.0
          %1741 = vmatpush2.msra.mxu0 0.0
          %1742 = vmatprep.subr.mxu0 0.0
          %1743 = vmatpush2.msra.mxu0 0.0
          %1744 = vmatprep.subr.mxu0 0.0
          %1745 = vmatpush2.msra.mxu0 0.0
          %1746 = vmatprep.subr.mxu0 0.0
          %1747 = vmatpush2.msra.mxu0 0.0
          %1748 = vmatprep.subr.mxu0 0.0
          %1749 = vmatpush2.msra.mxu0 0.0
          %1750 = vmatprep.subr.mxu0 0.0
          %1751 = vmatpush2.msra.mxu0 0.0
          %1752 = vmatprep.subr.mxu0 0.0
          %1753 = vmatpush2.msra.mxu0 0.0
          %1754 = vmatprep.subr.mxu0 0.0
          %1755 = vmatpush2.msra.mxu0 0.0
          %1756 = vmatprep.subr.mxu0 0.0
          %1757 = vmatpush2.msra.mxu0 0.0
          %1758 = vmatprep.subr.mxu0 0.0
          %1759 = vmatpush2.msra.mxu0 0.0
          %1760 = vmatprep.subr.mxu0 0.0
          %1761 = vmatpush2.msra.mxu0 0.0
          %1762 = vmatprep.subr.mxu0 0.0
          %1763 = vmatpush2.msra.mxu0 0.0
          %1764 = vmatprep.subr.mxu0 0.0
          %1765 = vmatpush2.msra.mxu0 0.0
          %1766 = vmatprep.subr.mxu0 0.0
          %1767 = vmatpush2.msra.mxu0 0.0
          %1768 = vmatprep.subr.mxu0 0.0
          %1769 = vmatpush2.msra.mxu0 0.0
          %1770 = vmatprep.subr.mxu0 0.0
          %1771 = vmatpush2.msra.mxu0 0.0
          %1772 = vmatprep.mubr.f32.mxu0 0.0
          %1773 = vmatmul.mubr.f32.gmra.mxu0 %v1691
          %v1774 = vpop.f32.mrf.mxu0
          %v1775 = vadd.f32 0.0, %v1774
          %v1776 = vpop.f32.mrf.mxu0
          %1777 = vdwg.mxu0
          %1778 = vst [vmem:[#allocation12] sm:$0xff] %v1775
        $region72: #{tpu_custom_call.1} parent=43 // pred_fallthru
          _
        // Predicated region
        $region73: #{tpu_custom_call.1} parent=43 // pred_check
          %p1779 = pneg %p167
        $region74: #{tpu_custom_call.1} parent=43 // pred_check_branch
          %1781 = sbr.rel (%p1779) target = $region76
        $region75: #{tpu_custom_call.1} parent=43 // pred_region
          %s1783 = ssub.s32 128, 128
          %1784 = vsyncadd [#allocation5], %s1783
          %s1786 = sshll.u32 [#allocation12], 4
          %s1787 = int_to_ptr.vmem [resolvable:$true] %s1786
          %1789 = dma.vmem_to_hbm [thread:$0]  %s1787, 128, %s6, [#allocation5]
        $region76: #{tpu_custom_call.1} parent=43 // pred_fallthru
          _
        // Predicated region
        $region77: #{tpu_custom_call.1} parent=43 // pred_check
          %p1790 = pneg %p167
        $region78: #{tpu_custom_call.1} parent=43 // pred_check_branch
          %1792 = sbr.rel (%p1790) target = $region80
        $region79: #{tpu_custom_call.1} parent=43 // pred_region
          %1793 = dma.done [#allocation5], 128
        $region80: #{tpu_custom_call.1} parent=43 // pred_fallthru
          _
      $region44: #{tpu_custom_call.1} parent=5 // pred_fallthru
        _
      %p1794 = scmp.le.s32.totalorder 2, %s18
      // Predicated region
      $region81: #{tpu_custom_call.1} parent=5 // pred_check
        %p1795 = pneg %p1794
      $region82: #{tpu_custom_call.1} parent=5 // pred_check_branch
        %1797 = sbr.rel (%p1795) target = $region84
      $region83: #{tpu_custom_call.1} parent=5 // pred_region
        %s1798 = ssub.s32 %s18, 2
      $region84: #{tpu_custom_call.1} parent=5 // pred_fallthru
        _
    $region6: #{tpu_custom_call.1} parent=1 // loop_footer
      %s22 = sadd.s32 1, %s18
    $region7: #{tpu_custom_call.1} parent=1 // loop_footer_branch
      %17 = sbr.rel target = $region3
    $region8: #{tpu_custom_call.1} parent=1 // loop_exit
      _
    %1799 = vsyncpa [#allocation4], 1
    %s1800 = scalar_lea.sflag [#allocation4], 1
    %1801 = vsyncpa %s1800, 1
    %1802 = vsyncpa [#allocation7], 1
    %1803 = vsyncpa [#allocation10], 1
    %s1804 = scalar_lea.sflag [#allocation10], 1
    %1805 = vsyncpa %s1804, 1
    %1806 = vsyncpa [#allocation5], 1
    %s1807 = scalar_lea.sflag [#allocation5], 1
    %1808 = vsyncpa %s1807, 1

</llo_original>
